<compile_context>
chip_gen: v7x
topology: tpu7x:2x2x1
jax: 0.10.0
libtpu: 0.0.40
codegen_flags: <defaults>
</compile_context>

<pallas_src>
import functools

import jax
import jax.numpy as jnp
from jax.experimental import pallas as pl
from jax.experimental.pallas import tpu as pltpu

_NEG_BIG = -1e30  # bias value for padded vocab columns (exp underflows to 0)


# ---------------------------------------------------------------------------
# Kernel
# ---------------------------------------------------------------------------
def _decoder_kernel(xh_ref, c_ref, wg_ref, bg_ref, wl_ref, bl_ref,
                    logits_ref, hnew_ref, cnew_ref, lse_ref,
                    h_scr, m_scr, l_scr, *, units):
    """Grid point (s, j): split s handles its own vocab range, tile j of it.

    j == 0 additionally runs the fused LSTM cell (f32) and initializes the
    online log-softmax statistics; the last j of each split writes that
    split's log-sum-exp.
    """
    j = pl.program_id(1)
    U = units

    @pl.when(j == 0)
    def _lstm_cell():
        # Fused gate matmul in f32: [x, h] @ [W_ih ; W_hh]^T  (single MXU pass,
        # tiny vs. the logits stream, so keep full precision for the state).
        gates = (jnp.dot(xh_ref[...], wg_ref[...],
                         preferred_element_type=jnp.float32)
                 + bg_ref[...])                                   # (B, 4U) f32
        # NOTE: lane-aligned slices require units % 128 == 0 (asserted in the
        # wrapper); otherwise these become XLU relayout copies.
        i_g = jax.nn.sigmoid(gates[:, 0 * U:1 * U])
        f_g = jax.nn.sigmoid(gates[:, 1 * U:2 * U])
        g_g = jnp.tanh(gates[:, 2 * U:3 * U])
        o_g = jax.nn.sigmoid(gates[:, 3 * U:4 * U])

        c_new = f_g * c_ref[...] + i_g * g_g
        h_new = o_g * jnp.tanh(c_new)

        cnew_ref[...] = c_new[None, :, :]
        hnew_ref[...] = h_new[None, :, :]
        h_scr[...] = h_new.astype(h_scr.dtype)   # compute-dtype stash (bf16)

        # init online-softmax stats for this split
        m_scr[...] = jnp.full(m_scr.shape, -jnp.inf, dtype=m_scr.dtype)
        l_scr[...] = jnp.zeros(l_scr.shape, dtype=l_scr.dtype)

    # Logits tile: (B, TILE_V) = h_new @ w_l_tile + b_l_tile  (bf16 operands,
    # f32 accumulation), stored as bf16 to halve writeback traffic.
    logits = (jnp.dot(h_scr[...], wl_ref[...],
                      preferred_element_type=jnp.float32)
              + bl_ref[...])
    logits_ref[...] = logits.astype(logits_ref.dtype)

    # Online log-sum-exp accumulation over this split's vocab tiles (f32).
    m_prev = m_scr[...]
    m_new = jnp.maximum(m_prev, jnp.max(logits, axis=1, keepdims=True))
    l_scr[...] = (l_scr[...] * jnp.exp(m_prev - m_new)
                  + jnp.sum(jnp.exp(logits - m_new), axis=1, keepdims=True))
    m_scr[...] = m_new

    @pl.when(j == pl.num_programs(1) - 1)
    def _finalize():
        lse_ref[...] = (m_scr[...] + jnp.log(l_scr[...]))[None, :, :]


# ---------------------------------------------------------------------------
# Sizing helpers
# ---------------------------------------------------------------------------
def _round_up(x, m):
    return ((x + m - 1) // m) * m


def _choose_tile_v(V, units, batch_hint, w_itemsize, num_splits,
                   budget_bytes=20 << 20):
    """Pick a vocab tile so double-buffered streamed blocks fit the budget.

    Streamed per column (x2 for double buffering): w_l column (bf16), b_l
    column (f32) and the bf16 logits output column.
    """
    per_col = 2 * (units * w_itemsize + 4 + batch_hint * 2)
    tv = max(128, (budget_bytes // per_col) // 128 * 128)
    per_split_ceil = _round_up(max(1, -(-V // num_splits)), 128)
    return int(min(tv, 16384, per_split_ceil))


def _vmem_limit_bytes():
    """Generation-aware scoped VMEM limit (v7x has 64 MiB/TC, v5e/v6e 128)."""
    cap = 128 << 20
    try:
        cap = int(pltpu.get_tpu_info().vmem_capacity_bytes)
    except Exception:
        pass
    return int(max(24 << 20, min(int(0.45 * cap), 64 << 20)))


# ---------------------------------------------------------------------------
# One-time parameter preparation (hoisted out of the per-token call)
# ---------------------------------------------------------------------------
def prepare_decoder_params(params, *, tile_v=None, num_splits=2,
                           use_bf16=True, batch_hint=8):
    """Pre-transpose / cast / pad the weights once.

    Returns (weights, meta): `weights` is a dict of arrays to pass to
    lang_decoder_forward; `meta` is a dict of static ints (vocab_size, tile_v,
    num_splits) to bind as keyword args (e.g. via functools.partial).
    """
    U = int(params["w_hh"].shape[1])          # w_hh: (4U, U)
    V = int(params["w_logits"].shape[0])
    cdt = jnp.bfloat16 if use_bf16 else jnp.float32
    w_itemsize = jnp.dtype(cdt).itemsize

    # Gate weights stay f32 (recurrent-state precision); fused + pre-transposed
    # so the kernel is purely activations @ W.
    w_gates = jnp.concatenate([params["w_ih"], params["w_hh"]],
                              axis=1).T.astype(jnp.float32)        # (K, 4U)
    b_gates = (params["b_ih"] + params["b_hh"])[None, :].astype(jnp.float32)

    # Logits weights in compute dtype, pre-transposed + vocab-padded.
    w_l_t = params["w_logits"].T.astype(cdt)                       # (U, V)
    b_l = params["b_logits"][None, :].astype(jnp.float32)          # (1, V)

    num_splits = max(1, int(num_splits))
    if tile_v is None:
        tile_v = _choose_tile_v(V, U, batch_hint, w_itemsize, num_splits)
    tile_v = max(128, (int(tile_v) // 128) * 128)
    # Clamp explicit tile_v so V_pad can't silently balloon past the vocab.
    tile_v = min(tile_v, _round_up(max(1, -(-V // num_splits)), 128))

    V_pad = _round_up(V, tile_v * num_splits)
    if V_pad != V:
        w_l_t = jnp.pad(w_l_t, ((0, 0), (0, V_pad - V)))
        b_l = jnp.pad(b_l, ((0, 0), (0, V_pad - V)), constant_values=_NEG_BIG)

    weights = dict(embed=params["embed"].astype(jnp.float32),
                   w_gates=w_gates, b_gates=b_gates,
                   w_l_t=w_l_t, b_l=b_l)
    meta = dict(vocab_size=V, tile_v=int(tile_v), num_splits=num_splits)
    return weights, meta


# ---------------------------------------------------------------------------
# Forward
# ---------------------------------------------------------------------------
def lang_decoder_forward(Xs, states, Xv, weights, *, vocab_size, tile_v,
                         num_splits, log_softmax=True):
    """JAX/Pallas equivalent of LangDecoder.forward.

    Xs: (B,) int32 token ids
    states: (h, c), each (B, units) float32
    Xv: (B, units) float32
    weights/meta: from prepare_decoder_params (weights prepared ONCE).
    Returns (log_probs (B, vocab), (h_new, c_new)).
    """
    h0, c0 = states
    B = int(Xs.shape[0])
    U = int(h0.shape[1])
    assert U % 128 == 0, "units must be a multiple of 128 for lane-aligned gates"

    embed = weights["embed"]
    E = int(embed.shape[1])
    K = E + 2 * U
    w_l_t = weights["w_l_t"]
    b_l = weights["b_l"]
    V = int(vocab_size)
    V_pad = int(w_l_t.shape[1])
    cdt = w_l_t.dtype
    assert V_pad % (tile_v * num_splits) == 0
    tiles_per_split = V_pad // (tile_v * num_splits)

    # Glue: embedding gather + concat [embed(Xs), Xv, h]  (data-dependent gather).
    xs_emb = jnp.take(embed, Xs, axis=0)                           # (B, E)
    xh = jnp.concatenate([xs_emb, Xv.astype(jnp.float32),
                          h0.astype(jnp.float32)], axis=1)         # (B, K) f32
    c0f = c0.astype(jnp.float32)

    # Batch padding to the sublane multiple.
    B_pad = _round_up(B, 8)
    if B_pad != B:
        xh = jnp.pad(xh, ((0, B_pad - B), (0, 0)))
        c0f = jnp.pad(c0f, ((0, B_pad - B), (0, 0)))

    kernel = functools.partial(_decoder_kernel, units=U)

    # Advisory cost estimate for the XLA scheduler.
    w_itemsize = jnp.dtype(cdt).itemsize
    flops = int(2 * B_pad * K * 4 * U * num_splits + 2 * B_pad * U * V_pad)
    bytes_accessed = int(
        xh.size * 4 + c0f.size * 4
        + weights["w_gates"].size * 4 + weights["b_gates"].size * 4
        + w_l_t.size * w_itemsize + b_l.size * 4
        + B_pad * V_pad * 2                        # bf16 logits out
        + 2 * num_splits * B_pad * U * 4 + num_splits * B_pad * 4)
    cost = pl.CostEstimate(
        flops=flops,
        transcendentals=int(B_pad * (4 * U * num_splits + V_pad)),
        bytes_accessed=bytes_accessed)

    grid_spec = pltpu.PrefetchScalarGridSpec(
        num_scalar_prefetch=0,
        grid=(num_splits, tiles_per_split),
        in_specs=[
            pl.BlockSpec((B_pad, K), lambda s, j: (0, 0)),      # xh (resident)
            pl.BlockSpec((B_pad, U), lambda s, j: (0, 0)),      # c  (resident)
            pl.BlockSpec((K, 4 * U), lambda s, j: (0, 0)),      # w_gates (resident)
            pl.BlockSpec((1, 4 * U), lambda s, j: (0, 0)),      # b_gates (resident)
            pl.BlockSpec((U, tile_v),                           # w_l tile (streamed)
                         lambda s, j: (0, s * tiles_per_split + j)),
            pl.BlockSpec((1, tile_v),                           # b_l tile (streamed)
                         lambda s, j: (0, s * tiles_per_split + j)),
        ],
        out_specs=(
            pl.BlockSpec((B_pad, tile_v),                       # raw logits tiles
                         lambda s, j: (0, s * tiles_per_split + j)),
            pl.BlockSpec((1, B_pad, U), lambda s, j: (s, 0, 0)),  # h_new (per split)
            pl.BlockSpec((1, B_pad, U), lambda s, j: (s, 0, 0)),  # c_new (per split)
            pl.BlockSpec((1, B_pad, 1), lambda s, j: (s, 0, 0)),  # per-split lse
        ),
        scratch_shapes=[
            pltpu.VMEM((B_pad, U), cdt),           # h_new stash (matmul dtype)
            pltpu.VMEM((B_pad, 1), jnp.float32),   # running max m
            pltpu.VMEM((B_pad, 1), jnp.float32),   # running sum-exp l
        ],
    )

    logits, h_new, c_new, lse = pl.pallas_call(
        kernel,
        out_shape=(
            jax.ShapeDtypeStruct((B_pad, V_pad), jnp.bfloat16),
            jax.ShapeDtypeStruct((num_splits, B_pad, U), jnp.float32),
            jax.ShapeDtypeStruct((num_splits, B_pad, U), jnp.float32),
            jax.ShapeDtypeStruct((num_splits, B_pad, 1), jnp.float32),
        ),
        grid_spec=grid_spec,
        compiler_params=pltpu.CompilerParams(
            dimension_semantics=("parallel", "arbitrary"),
            vmem_limit_bytes=_vmem_limit_bytes()),
        cost_estimate=cost,
    )(xh, c0f, weights["w_gates"], weights["b_gates"], w_l_t, b_l)

    # Merge the per-split online-softmax statistics; both splits computed the
    # same LSTM cell, take split 0's copy.
    h_out = h_new[0, :B]
    c_out = c_new[0, :B]
    logits_f32 = logits[:B, :V].astype(jnp.float32)
    if log_softmax:
        lse_full = jax.nn.logsumexp(lse[:, :B, :], axis=0)      # (B, 1)
        out = logits_f32 - lse_full     # one cheap mem-bound normalization pass
    else:
        out = logits_f32
    return out, (h_out, c_out)


# ---------------------------------------------------------------------------
# Parameter init (mirrors LangDecoder.reset_parameters) + reference
# ---------------------------------------------------------------------------
def init_params(key, units, vocab_size, embed_dim):
    k_embed, k_wih, k_whh, k_wl, k_bl = jax.random.split(key, 5)

    # Embedding ~ U(-0.1, 0.1)
    embed = jax.random.uniform(k_embed, (vocab_size, embed_dim),
                               minval=-0.1, maxval=0.1, dtype=jnp.float32)

    in_dim = embed_dim + units
    bound = 1.0 / jnp.sqrt(units)
    w_ih = jax.random.uniform(k_wih, (4 * units, in_dim),
                              minval=-bound, maxval=bound, dtype=jnp.float32)
    # weight_hh: orthogonal per gate block
    blocks = []
    for i in range(4):
        a = jax.random.normal(jax.random.fold_in(k_whh, i), (units, units),
                              dtype=jnp.float32)
        q, r = jnp.linalg.qr(a)
        q = q * jnp.sign(jnp.diag(r))[None, :]
        blocks.append(q)
    w_hh = jnp.concatenate(blocks, axis=0)                 # (4U, U)

    b_ih = jnp.zeros((4 * units,), jnp.float32)
    b_hh = jnp.zeros((4 * units,), jnp.float32)

    lbound = 1.0 / jnp.sqrt(units)
    w_logits = jax.random.uniform(k_wl, (vocab_size, units),
                                  minval=-lbound, maxval=lbound,
                                  dtype=jnp.float32)
    b_logits = jax.random.uniform(k_bl, (vocab_size,),
                                  minval=-lbound, maxval=lbound,
                                  dtype=jnp.float32)

    return dict(embed=embed, w_ih=w_ih, w_hh=w_hh, b_ih=b_ih, b_hh=b_hh,
                w_logits=w_logits, b_logits=b_logits)


def _reference_forward(Xs, states, Xv, params):
    """Pure-JAX f32 reference of the PyTorch forward for correctness checking."""
    h, c = states
    U = h.shape[1]
    x = jnp.concatenate([jnp.take(params["embed"], Xs, axis=0), Xv], axis=1)
    gates = (x @ params["w_ih"].T + params["b_ih"]
             + h @ params["w_hh"].T + params["b_hh"])
    i_g = jax.nn.sigmoid(gates[:, 0 * U:1 * U])
    f_g = jax.nn.sigmoid(gates[:, 1 * U:2 * U])
    g_g = jnp.tanh(gates[:, 2 * U:3 * U])
    o_g = jax.nn.sigmoid(gates[:, 3 * U:4 * U])
    c_new = f_g * c + i_g * g_g
    h_new = o_g * jnp.tanh(c_new)
    logits = h_new @ params["w_logits"].T + params["b_logits"]
    return jax.nn.log_softmax(logits, axis=1), (h_new, c_new)


if __name__ == "__main__":
    # Small, lane-aligned shapes: units/embed multiple of 128, vocab 1000 ->
    # V_pad 1024 with tile_v=256 and num_splits=2 (2 tiles per split), which
    # exercises the streamed pipeline, the per-split online log-softmax, the
    # split merge and the vocab padding path.
    units, vocab_size, embed_dim, batch = 128, 1000, 128, 8

    key = jax.random.PRNGKey(0)
    k_p, k_tok, k_h, k_c, k_v = jax.random.split(key, 5)

    params = init_params(k_p, units, vocab_size, embed_dim)

    Xs = jax.random.randint(k_tok, (batch,), 0, vocab_size, dtype=jnp.int32)
    h0 = jax.random.normal(k_h, (batch, units), dtype=jnp.float32)
    c0 = jax.random.normal(k_c, (batch, units), dtype=jnp.float32)
    Xv = jax.random.normal(k_v, (batch, units), dtype=jnp.float32)

    # One-time weight preprocessing (hoisted out of the per-token call).
    weights, meta = prepare_decoder_params(params, tile_v=256, num_splits=2,
                                           use_bf16=True, batch_hint=batch)
    decoder_step = jax.jit(functools.partial(lang_decoder_forward, **meta))

    logp, (h1, c1) = decoder_step(Xs, (h0, c0), Xv, weights)
    jax.block_until_ready((logp, h1, c1))

    # Sanity check vs pure-JAX f32 reference (gate matmul is f32 -> tight h/c
    # tolerance; logits matmul uses bf16 operands + bf16 output -> loose atol).
    logp_r, (h1_r, c1_r) = _reference_forward(Xs, (h0, c0), Xv, params)
    assert logp.shape == (batch, vocab_size)
    assert jnp.allclose(h1, h1_r, atol=2e-3), \
        f"h mismatch, max diff {float(jnp.max(jnp.abs(h1 - h1_r)))}"
    assert jnp.allclose(c1, c1_r, atol=2e-3), \
        f"c mismatch, max diff {float(jnp.max(jnp.abs(c1 - c1_r)))}"
    assert jnp.allclose(logp, logp_r, atol=5e-2), \
        f"logp mismatch, max diff {float(jnp.max(jnp.abs(logp - logp_r)))}"

    print("KERNEL_OK")
</pallas_src>

<mosaic_0001>
module attributes {stable_mosaic.version = 11 : i64} {
  func.func @_decoder_kernel(%arg0: i32, %arg1: i32, %arg2: memref<8x384xf32, #tpu.memory_space<vmem>>, %arg3: memref<8x128xf32, #tpu.memory_space<vmem>>, %arg4: memref<384x512xf32, #tpu.memory_space<vmem>>, %arg5: memref<1x512xf32, #tpu.memory_space<vmem>>, %arg6: memref<128x256xbf16, #tpu.memory_space<vmem>>, %arg7: memref<1x256xf32, #tpu.memory_space<vmem>>, %arg8: memref<8x256xbf16, #tpu.memory_space<vmem>>, %arg9: memref<1x8x128xf32, #tpu.memory_space<vmem>>, %arg10: memref<1x8x128xf32, #tpu.memory_space<vmem>>, %arg11: memref<1x8x1xf32, #tpu.memory_space<vmem>>, %arg12: memref<8x128xbf16, #tpu.memory_space<vmem>>, %arg13: memref<8x1xf32, #tpu.memory_space<vmem>>, %arg14: memref<8x1xf32, #tpu.memory_space<vmem>>) attributes {dimension_semantics = [#tpu.dimension_semantics<parallel>, #tpu.dimension_semantics<arbitrary>], iteration_bounds = array<i64: 2, 2>, scalar_prefetch = 0 : i64, scratch_operands = 3 : i64, tpu.core_type = #tpu.core_type<tc>, window_params = [{pipeline_mode = #tpu.pipeline_mode<synchronous>, transform_indices = @transform_0, window_bounds = array<i64: 8, 384>}, {pipeline_mode = #tpu.pipeline_mode<synchronous>, transform_indices = @transform_1, window_bounds = array<i64: 8, 128>}, {pipeline_mode = #tpu.pipeline_mode<synchronous>, transform_indices = @transform_2, window_bounds = array<i64: 384, 512>}, {pipeline_mode = #tpu.pipeline_mode<synchronous>, transform_indices = @transform_3, window_bounds = array<i64: 1, 512>}, {transform_indices = @transform_4, window_bounds = array<i64: 128, 256>}, {transform_indices = @transform_5, window_bounds = array<i64: 1, 256>}, {transform_indices = @transform_6, window_bounds = array<i64: 8, 256>}, {transform_indices = @transform_7, window_bounds = array<i64: 1, 8, 128>}, {transform_indices = @transform_8, window_bounds = array<i64: 1, 8, 128>}, {transform_indices = @transform_9, window_bounds = array<i64: 1, 8, 1>}]} {
    %c0_i32 = arith.constant 0 : i32
    %0 = arith.cmpi eq, %arg1, %c0_i32 : i32
    %1 = arith.extui %0 : i1 to i32
    %c0_i32_0 = arith.constant 0 : i32
    %2 = arith.cmpi ne, %1, %c0_i32_0 : i32
    scf.if %2 {
      %c0_19 = arith.constant 0 : index
      %c0_20 = arith.constant 0 : index
      %30 = vector.load %arg2[%c0_19, %c0_20] : memref<8x384xf32, #tpu.memory_space<vmem>>, vector<8x384xf32>
      %c0_21 = arith.constant 0 : index
      %c0_22 = arith.constant 0 : index
      %31 = vector.load %arg4[%c0_21, %c0_22] : memref<384x512xf32, #tpu.memory_space<vmem>>, vector<384x512xf32>
      %cst_23 = arith.constant dense<0.000000e+00> : vector<8x512xf32>
      %32 = tpu.matmul %30, %31, %cst_23 {dimension_numbers = #tpu.dot_dimension_numbers<[1], [0], [0], [1], [0, 0, 1, 1], [], []>} : vector<8x384xf32>, vector<384x512xf32>, vector<8x512xf32> -> vector<8x512xf32>
      %c0_24 = arith.constant 0 : index
      %c0_25 = arith.constant 0 : index
      %33 = vector.load %arg5[%c0_24, %c0_25] : memref<1x512xf32, #tpu.memory_space<vmem>>, vector<1x512xf32>
      %34 = vector.broadcast %33 : vector<1x512xf32> to vector<8x512xf32>
      %35 = arith.addf %32, %34 : vector<8x512xf32>
      %36 = vector.extract_strided_slice %35 {offsets = [0, 0], sizes = [8, 128], strides = [1, 1]} : vector<8x512xf32> to vector<8x128xf32>
      %37 = arith.negf %36 : vector<8x128xf32>
      %38 = math.exp %37 : vector<8x128xf32>
      %cst_26 = arith.constant 1.000000e+00 : f32
      %39 = vector.broadcast %cst_26 : f32 to vector<8x128xf32>
      %40 = arith.addf %39, %38 : vector<8x128xf32>
      %41 = arith.divf %39, %40 : vector<8x128xf32>
      %42 = vector.extract_strided_slice %35 {offsets = [0, 128], sizes = [8, 128], strides = [1, 1]} : vector<8x512xf32> to vector<8x128xf32>
      %43 = arith.negf %42 : vector<8x128xf32>
      %44 = math.exp %43 : vector<8x128xf32>
      %cst_27 = arith.constant 1.000000e+00 : f32
      %45 = vector.broadcast %cst_27 : f32 to vector<8x128xf32>
      %46 = arith.addf %45, %44 : vector<8x128xf32>
      %47 = arith.divf %45, %46 : vector<8x128xf32>
      %48 = vector.extract_strided_slice %35 {offsets = [0, 256], sizes = [8, 128], strides = [1, 1]} : vector<8x512xf32> to vector<8x128xf32>
      %49 = math.tanh %48 : vector<8x128xf32>
      %50 = vector.extract_strided_slice %35 {offsets = [0, 384], sizes = [8, 128], strides = [1, 1]} : vector<8x512xf32> to vector<8x128xf32>
      %51 = arith.negf %50 : vector<8x128xf32>
      %52 = math.exp %51 : vector<8x128xf32>
      %cst_28 = arith.constant 1.000000e+00 : f32
      %53 = vector.broadcast %cst_28 : f32 to vector<8x128xf32>
      %54 = arith.addf %53, %52 : vector<8x128xf32>
      %55 = arith.divf %53, %54 : vector<8x128xf32>
      %c0_29 = arith.constant 0 : index
      %c0_30 = arith.constant 0 : index
      %56 = vector.load %arg3[%c0_29, %c0_30] : memref<8x128xf32, #tpu.memory_space<vmem>>, vector<8x128xf32>
      %57 = arith.mulf %47, %56 : vector<8x128xf32>
      %58 = arith.mulf %41, %49 : vector<8x128xf32>
      %59 = arith.addf %57, %58 : vector<8x128xf32>
      %60 = math.tanh %59 : vector<8x128xf32>
      %61 = arith.mulf %55, %60 : vector<8x128xf32>
      %62 = vector.shape_cast %59 : vector<8x128xf32> to vector<1x8x128xf32>
      %c0_31 = arith.constant 0 : index
      %c0_32 = arith.constant 0 : index
      %c0_33 = arith.constant 0 : index
      %63 = vector.load %arg10[%c0_31, %c0_32, %c0_33] : memref<1x8x128xf32, #tpu.memory_space<vmem>>, vector<1x8x128xf32>
      tpu.vector_store %arg10[%c0_31, %c0_32, %c0_33], %62 {strides = array<i32>} : memref<1x8x128xf32, #tpu.memory_space<vmem>>, vector<1x8x128xf32>,
      %64 = vector.shape_cast %61 : vector<8x128xf32> to vector<1x8x128xf32>
      %c0_34 = arith.constant 0 : index
      %c0_35 = arith.constant 0 : index
      %c0_36 = arith.constant 0 : index
      %65 = vector.load %arg9[%c0_34, %c0_35, %c0_36] : memref<1x8x128xf32, #tpu.memory_space<vmem>>, vector<1x8x128xf32>
      tpu.vector_store %arg9[%c0_34, %c0_35, %c0_36], %64 {strides = array<i32>} : memref<1x8x128xf32, #tpu.memory_space<vmem>>, vector<1x8x128xf32>,
      %66 = arith.truncf %61 : vector<8x128xf32> to vector<8x128xbf16>
      %c0_37 = arith.constant 0 : index
      %c0_38 = arith.constant 0 : index
      %67 = vector.load %arg12[%c0_37, %c0_38] : memref<8x128xbf16, #tpu.memory_space<vmem>>, vector<8x128xbf16>
      tpu.vector_store %arg12[%c0_37, %c0_38], %66 {strides = array<i32>} : memref<8x128xbf16, #tpu.memory_space<vmem>>, vector<8x128xbf16>,
      %cst_39 = arith.constant 0xFF800000 : f32
      %68 = vector.broadcast %cst_39 : f32 to vector<8x1xf32>
      %c0_40 = arith.constant 0 : index
      %c0_41 = arith.constant 0 : index
      %69 = vector.load %arg13[%c0_40, %c0_41] : memref<8x1xf32, #tpu.memory_space<vmem>>, vector<8x1xf32>
      tpu.vector_store %arg13[%c0_40, %c0_41], %68 {strides = array<i32>} : memref<8x1xf32, #tpu.memory_space<vmem>>, vector<8x1xf32>,
      %cst_42 = arith.constant 0.000000e+00 : f32
      %70 = vector.broadcast %cst_42 : f32 to vector<8x1xf32>
      %c0_43 = arith.constant 0 : index
      %c0_44 = arith.constant 0 : index
      %71 = vector.load %arg14[%c0_43, %c0_44] : memref<8x1xf32, #tpu.memory_space<vmem>>, vector<8x1xf32>
      tpu.vector_store %arg14[%c0_43, %c0_44], %70 {strides = array<i32>} : memref<8x1xf32, #tpu.memory_space<vmem>>, vector<8x1xf32>,
    } else {
    }
    %c0 = arith.constant 0 : index
    %c0_1 = arith.constant 0 : index
    %3 = vector.load %arg12[%c0, %c0_1] : memref<8x128xbf16, #tpu.memory_space<vmem>>, vector<8x128xbf16>
    %c0_2 = arith.constant 0 : index
    %c0_3 = arith.constant 0 : index
    %4 = vector.load %arg6[%c0_2, %c0_3] : memref<128x256xbf16, #tpu.memory_space<vmem>>, vector<128x256xbf16>
    %cst = arith.constant dense<0.000000e+00> : vector<8x256xf32>
    %5 = tpu.matmul %3, %4, %cst {dimension_numbers = #tpu.dot_dimension_numbers<[1], [0], [0], [1], [0, 0, 1, 1], [], []>} : vector<8x128xbf16>, vector<128x256xbf16>, vector<8x256xf32> -> vector<8x256xf32>
    %c0_4 = arith.constant 0 : index
    %c0_5 = arith.constant 0 : index
    %6 = vector.load %arg7[%c0_4, %c0_5] : memref<1x256xf32, #tpu.memory_space<vmem>>, vector<1x256xf32>
    %7 = vector.broadcast %6 : vector<1x256xf32> to vector<8x256xf32>
    %8 = arith.addf %5, %7 : vector<8x256xf32>
    %9 = arith.truncf %8 : vector<8x256xf32> to vector<8x256xbf16>
    %c0_6 = arith.constant 0 : index
    %c0_7 = arith.constant 0 : index
    %10 = vector.load %arg8[%c0_6, %c0_7] : memref<8x256xbf16, #tpu.memory_space<vmem>>, vector<8x256xbf16>
    tpu.vector_store %arg8[%c0_6, %c0_7], %9 {strides = array<i32>} : memref<8x256xbf16, #tpu.memory_space<vmem>>, vector<8x256xbf16>,
    %c0_8 = arith.constant 0 : index
    %c0_9 = arith.constant 0 : index
    %11 = vector.load %arg13[%c0_8, %c0_9] : memref<8x1xf32, #tpu.memory_space<vmem>>, vector<8x1xf32>
    %cst_10 = arith.constant dense<0xFF800000> : vector<8xf32>
    %12 = vector.multi_reduction <maximumf>, %8, %cst_10 [1] : vector<8x256xf32> to vector<8xf32>
    %13 = vector.shape_cast %12 : vector<8xf32> to vector<8x1xf32>
    %14 = arith.maximumf %11, %13 : vector<8x1xf32>
    %c0_11 = arith.constant 0 : index
    %c0_12 = arith.constant 0 : index
    %15 = vector.load %arg14[%c0_11, %c0_12] : memref<8x1xf32, #tpu.memory_space<vmem>>, vector<8x1xf32>
    %16 = arith.subf %11, %14 : vector<8x1xf32>
    %17 = math.exp %16 : vector<8x1xf32>
    %18 = arith.mulf %15, %17 : vector<8x1xf32>
    %19 = vector.broadcast %14 : vector<8x1xf32> to vector<8x256xf32>
    %20 = arith.subf %8, %19 : vector<8x256xf32>
    %21 = math.exp %20 : vector<8x256xf32>
    %cst_13 = arith.constant dense<0.000000e+00> : vector<8xf32>
    %22 = vector.multi_reduction <add>, %21, %cst_13 [1] : vector<8x256xf32> to vector<8xf32>
    %23 = vector.shape_cast %22 : vector<8xf32> to vector<8x1xf32>
    %24 = arith.addf %18, %23 : vector<8x1xf32>
    %c0_14 = arith.constant 0 : index
    %c0_15 = arith.constant 0 : index
    %25 = vector.load %arg14[%c0_14, %c0_15] : memref<8x1xf32, #tpu.memory_space<vmem>>, vector<8x1xf32>
    tpu.vector_store %arg14[%c0_14, %c0_15], %24 {strides = array<i32>} : memref<8x1xf32, #tpu.memory_space<vmem>>, vector<8x1xf32>,
    %c0_16 = arith.constant 0 : index
    %c0_17 = arith.constant 0 : index
    %26 = vector.load %arg13[%c0_16, %c0_17] : memref<8x1xf32, #tpu.memory_space<vmem>>, vector<8x1xf32>
    tpu.vector_store %arg13[%c0_16, %c0_17], %14 {strides = array<i32>} : memref<8x1xf32, #tpu.memory_space<vmem>>, vector<8x1xf32>,
    %c1_i32 = arith.constant 1 : i32
    %27 = arith.cmpi eq, %arg1, %c1_i32 : i32
    %28 = arith.extui %27 : i1 to i32
    %c0_i32_18 = arith.constant 0 : i32
    %29 = arith.cmpi ne, %28, %c0_i32_18 : i32
    scf.if %29 {
      %c0_19 = arith.constant 0 : index
      %c0_20 = arith.constant 0 : index
      %30 = vector.load %arg13[%c0_19, %c0_20] : memref<8x1xf32, #tpu.memory_space<vmem>>, vector<8x1xf32>
      %c0_21 = arith.constant 0 : index
      %c0_22 = arith.constant 0 : index
      %31 = vector.load %arg14[%c0_21, %c0_22] : memref<8x1xf32, #tpu.memory_space<vmem>>, vector<8x1xf32>
      %32 = math.log %31 : vector<8x1xf32>
      %33 = arith.addf %30, %32 : vector<8x1xf32>
      %34 = vector.shape_cast %33 : vector<8x1xf32> to vector<1x8x1xf32>
      %c0_23 = arith.constant 0 : index
      %c0_24 = arith.constant 0 : index
      %c0_25 = arith.constant 0 : index
      %35 = vector.load %arg11[%c0_23, %c0_24, %c0_25] : memref<1x8x1xf32, #tpu.memory_space<vmem>>, vector<1x8x1xf32>
      tpu.vector_store %arg11[%c0_23, %c0_24, %c0_25], %34 {strides = array<i32>} : memref<1x8x1xf32, #tpu.memory_space<vmem>>, vector<1x8x1xf32>,
    } else {
    }
    return
  }
  func.func @transform_0(%arg0: i32, %arg1: i32) -> (i32, i32) {
    %c0_i32 = arith.constant 0 : i32
    %c0_i32_0 = arith.constant 0 : i32
    %c0_i32_1 = arith.constant 0 : i32
    return %c0_i32, %c0_i32_0 : i32, i32
  }
  func.func @transform_1(%arg0: i32, %arg1: i32) -> (i32, i32) {
    %c0_i32 = arith.constant 0 : i32
    %c0_i32_0 = arith.constant 0 : i32
    %c0_i32_1 = arith.constant 0 : i32
    return %c0_i32, %c0_i32_0 : i32, i32
  }
  func.func @transform_2(%arg0: i32, %arg1: i32) -> (i32, i32) {
    %c0_i32 = arith.constant 0 : i32
    %c0_i32_0 = arith.constant 0 : i32
    %c0_i32_1 = arith.constant 0 : i32
    return %c0_i32, %c0_i32_0 : i32, i32
  }
  func.func @transform_3(%arg0: i32, %arg1: i32) -> (i32, i32) {
    %c0_i32 = arith.constant 0 : i32
    %c0_i32_0 = arith.constant 0 : i32
    %c0_i32_1 = arith.constant 0 : i32
    return %c0_i32, %c0_i32_0 : i32, i32
  }
  func.func @transform_4(%arg0: i32, %arg1: i32) -> (i32, i32) {
    %c2_i32 = arith.constant 2 : i32
    %0 = arith.muli %arg0, %c2_i32 : i32
    %1 = arith.addi %0, %arg1 : i32
    %c0_i32 = arith.constant 0 : i32
    %c0_i32_0 = arith.constant 0 : i32
    return %c0_i32, %1 : i32, i32
  }
  func.func @transform_5(%arg0: i32, %arg1: i32) -> (i32, i32) {
    %c2_i32 = arith.constant 2 : i32
    %0 = arith.muli %arg0, %c2_i32 : i32
    %1 = arith.addi %0, %arg1 : i32
    %c0_i32 = arith.constant 0 : i32
    %c0_i32_0 = arith.constant 0 : i32
    return %c0_i32, %1 : i32, i32
  }
  func.func @transform_6(%arg0: i32, %arg1: i32) -> (i32, i32) {
    %c2_i32 = arith.constant 2 : i32
    %0 = arith.muli %arg0, %c2_i32 : i32
    %1 = arith.addi %0, %arg1 : i32
    %c0_i32 = arith.constant 0 : i32
    %c0_i32_0 = arith.constant 0 : i32
    return %c0_i32, %1 : i32, i32
  }
  func.func @transform_7(%arg0: i32, %arg1: i32) -> (i32, i32, i32) {
    %c0_i32 = arith.constant 0 : i32
    %c0_i32_0 = arith.constant 0 : i32
    %c0_i32_1 = arith.constant 0 : i32
    return %arg0, %c0_i32, %c0_i32_0 : i32, i32, i32
  }
  func.func @transform_8(%arg0: i32, %arg1: i32) -> (i32, i32, i32) {
    %c0_i32 = arith.constant 0 : i32
    %c0_i32_0 = arith.constant 0 : i32
    %c0_i32_1 = arith.constant 0 : i32
    return %arg0, %c0_i32, %c0_i32_0 : i32, i32, i32
  }
  func.func @transform_9(%arg0: i32, %arg1: i32) -> (i32, i32, i32) {
    %c0_i32 = arith.constant 0 : i32
    %c0_i32_0 = arith.constant 0 : i32
    %c0_i32_1 = arith.constant 0 : i32
    return %arg0, %c0_i32, %c0_i32_0 : i32, i32, i32
  }
}

</mosaic_0001>

<llo_original>
// kernel: lang_decoder_forward.1
$region0: #{lang_decoder_forward.1}
  #allocation0 [shape = 'u32[]', space=smem, size = 0x4, offset = 0x4, fixed_abs, tag = 'smem constant byte address 0x4 - core index']
  #allocation1 [shape = 'u32[144,128]{1,0:T(1,128)}', space=vmem, size = 0x12000, scoped, tag = 'internal scratch']
  #allocation2 [shape = 'bf16[8,128]{1,0:T(8,128)(2,1)}', space=vmem, size = 0x800, scoped, tag = 'scratch operand']
  #allocation3 [shape = 'f32[8,1]{1,0:T(8,128)}', space=vmem, size = 0x1000, scoped, tag = 'scratch operand']
  #allocation4 [shape = 'f32[8,1]{1,0:T(8,128)}', space=vmem, size = 0x1000, scoped, tag = 'scratch operand']
  %s0 = inlined_call_operand.vmem [shape: f32[8,384], index: 0, kind: input, shape index: {}]
  %s1 = inlined_call_operand.vmem [shape: f32[8,128], index: 1, kind: input, shape index: {}]
  %s2 = inlined_call_operand.hbm [shape: f32[384,512], index: 2, kind: input, shape index: {}]
  %s3 = inlined_call_operand.vmem [shape: f32[1,512], index: 3, kind: input, shape index: {}]
  %s4 = inlined_call_operand.hbm [shape: bf16[128,1024], index: 4, kind: input, shape index: {}]
  %s5 = inlined_call_operand.vmem [shape: f32[1,1024], index: 5, kind: input, shape index: {}]
  %s6 = inlined_call_operand.vmem [shape: bf16[8,1024], index: 6, kind: output, shape index: {0}]
  %s7 = inlined_call_operand.vmem [shape: f32[2,8,128], index: 7, kind: output, shape index: {1}]
  %s8 = inlined_call_operand.vmem [shape: f32[2,8,128], index: 8, kind: output, shape index: {2}]
  %s9 = inlined_call_operand.vmem [shape: f32[2,8,1], index: 9, kind: output, shape index: {3}]
  %10 = xla_tuple %s6, %s7, %s8, %s9
  %s11 = sld [smem:[#allocation0]]
  $region97: #{lang_decoder_forward.1} parent=0
    _
  %s13 = ssub.s32 1, %s11
  %s14 = scalar_select 0, %s13, %s11
  $region1: #{lang_decoder_forward.1} parent=0
    #allocation5 [shape = 'u8[786432]{0}', space=vmem, size = 0xc0000, scoped, tag = 'input window, operand 2, single buffered']
    #allocation6 [shape = 's32[2]{0}', space=sflag, size = 0x8, scoped, tag = 'scoped memory for lang_decoder_forward.1']
    #allocation7 [shape = 'u8[131072]{0}', space=vmem, size = 0x20000, scoped, tag = 'input window, operand 4']
    #allocation8 [shape = 's32[2]{0}', space=sflag, size = 0x8, scoped, tag = 'scoped memory for lang_decoder_forward.1']
    %15 = vsyncpa [#allocation6], 0
    %16 = vsyncpa [#allocation8], 0
    %s17 = scalar_lea.sflag [#allocation8], 1
    %18 = vsyncpa %s17, 0
    loop: start=0, step=1, limit=6
    $region2: #{lang_decoder_forward.1} parent=1 // loop_pre_header
      _
    $region3: #{lang_decoder_forward.1} parent=1 // loop_header
      %s20 = sphi 0, %s24
      %p21 = scmp.ge.s32.totalorder %s20, 6
      %s27 = sphi 0, %s39
      %s28 = sphi 0, %s35
      %s29 = sphi 0, %s27
      %s30 = sphi 0, %s28
      %s31 = sphi 0, %s29
      %s32 = sphi 0, %s30
      %s40 = sphi 0, %s40
      %s42 = sphi 0, %s40
      %s43 = sphi 0, %s42
      %s57 = sphi 0, %s43
      %s61 = sphi 0, %s61
      %s63 = sphi 0, %s61
      %s64 = sphi 0, %s63
      %s78 = sphi 0, %s64
      %s82 = sphi 0, %s82
      %s84 = sphi 0, %s82
      %s85 = sphi 0, %s84
      %s99 = sphi 0, %s85
      %s103 = sphi 0, %s103
      %s105 = sphi 0, %s103
      %s106 = sphi 0, %s105
      %s120 = sphi 0, %s106
      %s130 = sphi 0, %s132
      %s133 = sphi 0, %s130
      %s134 = sphi 0, %s133
      %s150 = sphi 0, %s134
      %s160 = sphi 0, %s162
      %s163 = sphi 0, %s160
      %s164 = sphi 0, %s163
      %s180 = sphi 0, %s164
      %s190 = sphi 0, %s192
      %s193 = sphi 0, %s190
      %s194 = sphi 0, %s193
      %s210 = sphi 0, %s194
      %s216 = sphi 0, %s218
      %s219 = sphi 0, %s216
      %s220 = sphi 0, %s219
      %s236 = sphi 0, %s220
      %s242 = sphi 0, %s244
      %s245 = sphi 0, %s242
      %s246 = sphi 0, %s245
      %s262 = sphi 0, %s246
      %s268 = sphi 0, %s270
      %s271 = sphi 0, %s268
      %s272 = sphi 0, %s271
      %s288 = sphi 0, %s272
    $region4: #{lang_decoder_forward.1} parent=1 // loop_header_branch
      %23 = sbr.rel (%p21) target = $region8
    $region5: #{lang_decoder_forward.1} parent=1 // loop_body
      %s25 = ssub.s32 %s20, 1
      %s26 = ssub.s32 %s20, 2
      %s33 = sadd.s32 1, %s28
      %p34 = scmp.ge.s32.totalorder %s33, 2
      %s35 = scalar_select %p34, 0, %s33
      %s36 = sadd.s32 1, %s27
      %s37 = scalar_select %p34, %s36, %s27
      %p38 = scmp.ge.s32.totalorder %s37, 2
      %s39 = scalar_select %p38, 0, %s37
      %s41 = sadd.s32 %s40, 1
      %p44 = scmp.eq.s32.totalorder %s20, 3
      %p45 = scmp.ne.s32.totalorder %s40, %s42
      %p46 = scmp.eq.s32.totalorder %s20, 0
      %p47 = por %p45, %p46
      %p48 = scmp.ne.s32.totalorder %s40, %s42
      %p49 = scmp.eq.s32.totalorder %s25, 3
      %p50 = por %p48, %p49
      %p51 = scmp.ne.s32.totalorder %s42, %s43
      %p52 = scmp.eq.s32.totalorder %s25, 0
      %p53 = por %p51, %p52
      %p54 = scmp.ne.s32.totalorder %s42, %s43
      %p55 = scmp.eq.s32.totalorder %s26, 3
      %p56 = por %p54, %p55
      %p58 = scmp.ne.s32.totalorder %s43, %s57
      %p59 = scmp.eq.s32.totalorder %s26, 0
      %p60 = por %p58, %p59
      %s62 = sadd.s32 %s61, 1
      %p65 = scmp.eq.s32.totalorder %s20, 3
      %p66 = scmp.ne.s32.totalorder %s61, %s63
      %p67 = scmp.eq.s32.totalorder %s20, 0
      %p68 = por %p66, %p67
      %p69 = scmp.ne.s32.totalorder %s61, %s63
      %p70 = scmp.eq.s32.totalorder %s25, 3
      %p71 = por %p69, %p70
      %p72 = scmp.ne.s32.totalorder %s63, %s64
      %p73 = scmp.eq.s32.totalorder %s25, 0
      %p74 = por %p72, %p73
      %p75 = scmp.ne.s32.totalorder %s63, %s64
      %p76 = scmp.eq.s32.totalorder %s26, 3
      %p77 = por %p75, %p76
      %p79 = scmp.ne.s32.totalorder %s64, %s78
      %p80 = scmp.eq.s32.totalorder %s26, 0
      %p81 = por %p79, %p80
      %s83 = sadd.s32 %s82, 1
      %p86 = scmp.eq.s32.totalorder %s20, 3
      %p87 = scmp.ne.s32.totalorder %s82, %s84
      %p88 = scmp.eq.s32.totalorder %s20, 0
      %p89 = por %p87, %p88
      %p90 = scmp.ne.s32.totalorder %s82, %s84
      %p91 = scmp.eq.s32.totalorder %s25, 3
      %p92 = por %p90, %p91
      %p93 = scmp.ne.s32.totalorder %s84, %s85
      %p94 = scmp.eq.s32.totalorder %s25, 0
      %p95 = por %p93, %p94
      %p96 = scmp.ne.s32.totalorder %s84, %s85
      %p97 = scmp.eq.s32.totalorder %s26, 3
      %p98 = por %p96, %p97
      %p100 = scmp.ne.s32.totalorder %s85, %s99
      %p101 = scmp.eq.s32.totalorder %s26, 0
      %p102 = por %p100, %p101
      %s104 = sadd.s32 %s103, 1
      %p107 = scmp.eq.s32.totalorder %s20, 3
      %p108 = scmp.ne.s32.totalorder %s103, %s105
      %p109 = scmp.eq.s32.totalorder %s20, 0
      %p110 = por %p108, %p109
      %p111 = scmp.ne.s32.totalorder %s103, %s105
      %p112 = scmp.eq.s32.totalorder %s25, 3
      %p113 = por %p111, %p112
      %p114 = scmp.ne.s32.totalorder %s105, %s106
      %p115 = scmp.eq.s32.totalorder %s25, 0
      %p116 = por %p114, %p115
      %p117 = scmp.ne.s32.totalorder %s105, %s106
      %p118 = scmp.eq.s32.totalorder %s26, 3
      %p119 = por %p117, %p118
      %p121 = scmp.ne.s32.totalorder %s106, %s120
      %p122 = scmp.eq.s32.totalorder %s26, 0
      %p123 = por %p121, %p122
      %s124 = smul.u32 %s27, 2
      %s125 = sadd.s32 %s124, %s28
      %s126 = smul.u32 %s39, 2
      %s127 = sadd.s32 %s126, %s35
      %s128 = ssub.s32 %s125, %s127
      %p129 = scmp.eq.s32.totalorder %s128, 0
      %s131 = sadd.s32 %s130, 1
      %s132 = scalar_select %p129, %s130, %s131
      %p135 = pneg %p129
      %p136 = scmp.eq.s32.totalorder %s20, 3
      %p137 = por %p135, %p136
      %p138 = scmp.ne.s32.totalorder %s130, %s133
      %p139 = scmp.eq.s32.totalorder %s20, 0
      %p140 = por %p138, %p139
      %p141 = scmp.ne.s32.totalorder %s130, %s133
      %p142 = scmp.eq.s32.totalorder %s25, 3
      %p143 = por %p141, %p142
      %p144 = scmp.ne.s32.totalorder %s133, %s134
      %p145 = scmp.eq.s32.totalorder %s25, 0
      %p146 = por %p144, %p145
      %p147 = scmp.ne.s32.totalorder %s133, %s134
      %p148 = scmp.eq.s32.totalorder %s26, 3
      %p149 = por %p147, %p148
      %p151 = scmp.ne.s32.totalorder %s134, %s150
      %p152 = scmp.eq.s32.totalorder %s26, 0
      %p153 = por %p151, %p152
      %s154 = smul.u32 %s27, 2
      %s155 = sadd.s32 %s154, %s28
      %s156 = smul.u32 %s39, 2
      %s157 = sadd.s32 %s156, %s35
      %s158 = ssub.s32 %s155, %s157
      %p159 = scmp.eq.s32.totalorder %s158, 0
      %s161 = sadd.s32 %s160, 1
      %s162 = scalar_select %p159, %s160, %s161
      %p165 = pneg %p159
      %p166 = scmp.eq.s32.totalorder %s20, 3
      %p167 = por %p165, %p166
      %p168 = scmp.ne.s32.totalorder %s160, %s163
      %p169 = scmp.eq.s32.totalorder %s20, 0
      %p170 = por %p168, %p169
      %p171 = scmp.ne.s32.totalorder %s160, %s163
      %p172 = scmp.eq.s32.totalorder %s25, 3
      %p173 = por %p171, %p172
      %p174 = scmp.ne.s32.totalorder %s163, %s164
      %p175 = scmp.eq.s32.totalorder %s25, 0
      %p176 = por %p174, %p175
      %p177 = scmp.ne.s32.totalorder %s163, %s164
      %p178 = scmp.eq.s32.totalorder %s26, 3
      %p179 = por %p177, %p178
      %p181 = scmp.ne.s32.totalorder %s164, %s180
      %p182 = scmp.eq.s32.totalorder %s26, 0
      %p183 = por %p181, %p182
      %s184 = smul.u32 %s27, 2
      %s185 = sadd.s32 %s184, %s28
      %s186 = smul.u32 %s39, 2
      %s187 = sadd.s32 %s186, %s35
      %s188 = ssub.s32 %s185, %s187
      %p189 = scmp.eq.s32.totalorder %s188, 0
      %s191 = sadd.s32 %s190, 1
      %s192 = scalar_select %p189, %s190, %s191
      %p195 = pneg %p189
      %p196 = scmp.eq.s32.totalorder %s20, 3
      %p197 = por %p195, %p196
      %p198 = scmp.ne.s32.totalorder %s190, %s193
      %p199 = scmp.eq.s32.totalorder %s20, 0
      %p200 = por %p198, %p199
      %p201 = scmp.ne.s32.totalorder %s190, %s193
      %p202 = scmp.eq.s32.totalorder %s25, 3
      %p203 = por %p201, %p202
      %p204 = scmp.ne.s32.totalorder %s193, %s194
      %p205 = scmp.eq.s32.totalorder %s25, 0
      %p206 = por %p204, %p205
      %p207 = scmp.ne.s32.totalorder %s193, %s194
      %p208 = scmp.eq.s32.totalorder %s26, 3
      %p209 = por %p207, %p208
      %p211 = scmp.ne.s32.totalorder %s194, %s210
      %p212 = scmp.eq.s32.totalorder %s26, 0
      %p213 = por %p211, %p212
      %s214 = ssub.s32 %s27, %s39
      %p215 = scmp.eq.s32.totalorder %s214, 0
      %s217 = sadd.s32 %s216, 1
      %s218 = scalar_select %p215, %s216, %s217
      %p221 = pneg %p215
      %p222 = scmp.eq.s32.totalorder %s20, 3
      %p223 = por %p221, %p222
      %p224 = scmp.ne.s32.totalorder %s216, %s219
      %p225 = scmp.eq.s32.totalorder %s20, 0
      %p226 = por %p224, %p225
      %p227 = scmp.ne.s32.totalorder %s216, %s219
      %p228 = scmp.eq.s32.totalorder %s25, 3
      %p229 = por %p227, %p228
      %p230 = scmp.ne.s32.totalorder %s219, %s220
      %p231 = scmp.eq.s32.totalorder %s25, 0
      %p232 = por %p230, %p231
      %p233 = scmp.ne.s32.totalorder %s219, %s220
      %p234 = scmp.eq.s32.totalorder %s26, 3
      %p235 = por %p233, %p234
      %p237 = scmp.ne.s32.totalorder %s220, %s236
      %p238 = scmp.eq.s32.totalorder %s26, 0
      %p239 = por %p237, %p238
      %s240 = ssub.s32 %s27, %s39
      %p241 = scmp.eq.s32.totalorder %s240, 0
      %s243 = sadd.s32 %s242, 1
      %s244 = scalar_select %p241, %s242, %s243
      %p247 = pneg %p241
      %p248 = scmp.eq.s32.totalorder %s20, 3
      %p249 = por %p247, %p248
      %p250 = scmp.ne.s32.totalorder %s242, %s245
      %p251 = scmp.eq.s32.totalorder %s20, 0
      %p252 = por %p250, %p251
      %p253 = scmp.ne.s32.totalorder %s242, %s245
      %p254 = scmp.eq.s32.totalorder %s25, 3
      %p255 = por %p253, %p254
      %p256 = scmp.ne.s32.totalorder %s245, %s246
      %p257 = scmp.eq.s32.totalorder %s25, 0
      %p258 = por %p256, %p257
      %p259 = scmp.ne.s32.totalorder %s245, %s246
      %p260 = scmp.eq.s32.totalorder %s26, 3
      %p261 = por %p259, %p260
      %p263 = scmp.ne.s32.totalorder %s246, %s262
      %p264 = scmp.eq.s32.totalorder %s26, 0
      %p265 = por %p263, %p264
      %s266 = ssub.s32 %s27, %s39
      %p267 = scmp.eq.s32.totalorder %s266, 0
      %s269 = sadd.s32 %s268, 1
      %s270 = scalar_select %p267, %s268, %s269
      %p273 = pneg %p267
      %p274 = scmp.eq.s32.totalorder %s20, 3
      %p275 = por %p273, %p274
      %p276 = scmp.ne.s32.totalorder %s268, %s271
      %p277 = scmp.eq.s32.totalorder %s20, 0
      %p278 = por %p276, %p277
      %p279 = scmp.ne.s32.totalorder %s268, %s271
      %p280 = scmp.eq.s32.totalorder %s25, 3
      %p281 = por %p279, %p280
      %p282 = scmp.ne.s32.totalorder %s271, %s272
      %p283 = scmp.eq.s32.totalorder %s25, 0
      %p284 = por %p282, %p283
      %p285 = scmp.ne.s32.totalorder %s271, %s272
      %p286 = scmp.eq.s32.totalorder %s26, 3
      %p287 = por %p285, %p286
      %p289 = scmp.ne.s32.totalorder %s272, %s288
      %p290 = scmp.eq.s32.totalorder %s26, 0
      %p291 = por %p289, %p290
      %p292 = scmp.le.s32.totalorder 1, %s20
      %p293 = scmp.lt.s32.totalorder %s20, 5
      %p294 = pnand %p292, %p293
      %p295 = pneg %p294
      // Predicated region
      $region9: #{lang_decoder_forward.1} parent=5 // pred_check
        _
      $region10: #{lang_decoder_forward.1} parent=5 // pred_check_branch
        %297 = sbr.rel (%p294) target = $region12
      $region11: #{lang_decoder_forward.1} parent=5 // pred_region
        %s298 = ssub.s32 %s20, 1
        // Predicated region
        $region13: #{lang_decoder_forward.1} parent=11 // pred_check
          %p299 = pneg %p53
        $region14: #{lang_decoder_forward.1} parent=11 // pred_check_branch
          %301 = sbr.rel (%p299) target = $region16
        $region15: #{lang_decoder_forward.1} parent=11 // pred_region
          _
        $region16: #{lang_decoder_forward.1} parent=11 // pred_fallthru
          _
        // Predicated region
        $region17: #{lang_decoder_forward.1} parent=11 // pred_check
          %p302 = pneg %p74
        $region18: #{lang_decoder_forward.1} parent=11 // pred_check_branch
          %304 = sbr.rel (%p302) target = $region20
        $region19: #{lang_decoder_forward.1} parent=11 // pred_region
          _
        $region20: #{lang_decoder_forward.1} parent=11 // pred_fallthru
          _
        // Predicated region
        $region21: #{lang_decoder_forward.1} parent=11 // pred_check
          %p305 = pneg %p95
        $region22: #{lang_decoder_forward.1} parent=11 // pred_check_branch
          %307 = sbr.rel (%p305) target = $region24
        $region23: #{lang_decoder_forward.1} parent=11 // pred_region
          %s309 = ssub.s32 24576, 24576
          %310 = vsyncadd [#allocation6], %s309
          %s311 = sshll.u32 [#allocation5], 4
          %s312 = int_to_ptr.vmem [resolvable:$true] %s311
          %317 = dma.hbm_to_vmem [thread:$0]  %s2, 24576, %s312, [#allocation6], 512, 512, 32
        $region24: #{lang_decoder_forward.1} parent=11 // pred_fallthru
          _
        // Predicated region
        $region25: #{lang_decoder_forward.1} parent=11 // pred_check
          %p318 = pneg %p116
        $region26: #{lang_decoder_forward.1} parent=11 // pred_check_branch
          %320 = sbr.rel (%p318) target = $region28
        $region27: #{lang_decoder_forward.1} parent=11 // pred_region
          _
        $region28: #{lang_decoder_forward.1} parent=11 // pred_fallthru
          _
      $region12: #{lang_decoder_forward.1} parent=5 // pred_fallthru
        _
      %p321 = scmp.lt.s32.totalorder %s20, 4
      // Predicated region
      $region29: #{lang_decoder_forward.1} parent=5 // pred_check
        %p322 = pneg %p321
      $region30: #{lang_decoder_forward.1} parent=5 // pred_check_branch
        %324 = sbr.rel (%p322) target = $region32
      $region31: #{lang_decoder_forward.1} parent=5 // pred_region
        // Predicated region
        $region33: #{lang_decoder_forward.1} parent=31 // pred_check
          %p325 = pneg %p140
        $region34: #{lang_decoder_forward.1} parent=31 // pred_check_branch
          %327 = sbr.rel (%p325) target = $region36
        $region35: #{lang_decoder_forward.1} parent=31 // pred_region
          %s328 = sand.u32 %s130, 1
          %s329 = scalar_lea.sflag [#allocation8], %s328
          %s330 = sand.u32 %s130, 1
          %s331 = smul.addr %s330, 128
          %s332 = scalar_lea.vmem [#allocation7], %s331
          %s333 = smul.u32 %s27, 2
          %s334 = sadd.s32 %s333, %s28
          %s335 = smul.u32 2, %s334
          %s337 = ssub.s32 2048, 2048
          %338 = vsyncadd %s329, %s337
          %s339 = smul.addr %s335, 64
          %s340 = scalar_lea.hbm %s4, %s339
          %s341 = sshll.u32 %s332, 4
          %s342 = int_to_ptr.vmem [resolvable:$true] %s341
          %347 = dma.hbm_to_vmem [thread:$0]  %s340, 2048, %s342, %s329, 512, 128, 8
        $region36: #{lang_decoder_forward.1} parent=31 // pred_fallthru
          _
        // Predicated region
        $region37: #{lang_decoder_forward.1} parent=31 // pred_check
          %p348 = pneg %p170
        $region38: #{lang_decoder_forward.1} parent=31 // pred_check_branch
          %350 = sbr.rel (%p348) target = $region40
        $region39: #{lang_decoder_forward.1} parent=31 // pred_region
          %s351 = smul.u32 %s27, 2
          %s352 = sadd.s32 %s351, %s28
          %s353 = smul.u32 2, %s352
          %p354 = scmp.lt.s32.totalorder %s353, 7
          %s355 = scalar_select %p354, %s353, 7
          %s356 = scalar_lea.vmem %s5, %s355
          %s357 = smul.u32 %s27, 2
          %s358 = sadd.s32 %s357, %s28
          %s359 = smul.u32 2, %s358
        $region40: #{lang_decoder_forward.1} parent=31 // pred_fallthru
          _
      $region32: #{lang_decoder_forward.1} parent=5 // pred_fallthru
        _
      %p360 = scmp.le.s32.totalorder 1, %s20
      %p361 = scmp.lt.s32.totalorder %s20, 5
      %p362 = pnand %p360, %p361
      %p363 = pneg %p362
      // Predicated region
      $region41: #{lang_decoder_forward.1} parent=5 // pred_check
        _
      $region42: #{lang_decoder_forward.1} parent=5 // pred_check_branch
        %365 = sbr.rel (%p362) target = $region44
      $region43: #{lang_decoder_forward.1} parent=5 // pred_region
        %s366 = ssub.s32 %s20, 1
        // Predicated region
        $region45: #{lang_decoder_forward.1} parent=43 // pred_check
          %p367 = pneg %p95
        $region46: #{lang_decoder_forward.1} parent=43 // pred_check_branch
          %369 = sbr.rel (%p367) target = $region48
        $region47: #{lang_decoder_forward.1} parent=43 // pred_region
          %370 = dma.done [#allocation6], 24576
        $region48: #{lang_decoder_forward.1} parent=43 // pred_fallthru
          _
        %s371 = sand.u32 %s133, 1
        %s372 = scalar_lea.sflag [#allocation8], %s371
        %s373 = sand.u32 %s133, 1
        %s374 = smul.addr %s373, 128
        %s375 = scalar_lea.vmem [#allocation7], %s374
        // Predicated region
        $region49: #{lang_decoder_forward.1} parent=43 // pred_check
          %p376 = pneg %p146
        $region50: #{lang_decoder_forward.1} parent=43 // pred_check_branch
          %378 = sbr.rel (%p376) target = $region52
        $region51: #{lang_decoder_forward.1} parent=43 // pred_region
          %379 = dma.done %s372, 2048
        $region52: #{lang_decoder_forward.1} parent=43 // pred_fallthru
          _
        %p380 = pneg %p53
        %p381 = pneg %p50
        %p382 = pneg %p74
        %p383 = pneg %p71
        %p384 = pneg %p95
        %p385 = pneg %p92
        %p386 = pneg %p116
        %p387 = pneg %p113
        %s388 = sand.u32 %s133, 1
        %s389 = scalar_lea.sflag [#allocation8], %s388
        %s390 = sand.u32 %s133, 1
        %s391 = smul.addr %s390, 128
        %s392 = scalar_lea.vmem [#allocation7], %s391
        %p393 = pneg %p146
        %p394 = pneg %p143
        %s395 = smul.u32 %s29, 2
        %s396 = sadd.s32 %s395, %s30
        %s397 = smul.u32 2, %s396
        %p398 = scmp.lt.s32.totalorder %s397, 7
        %s399 = scalar_select %p398, %s397, 7
        %s400 = scalar_lea.vmem %s5, %s399
        %p401 = pneg %p176
        %p402 = pneg %p173
        %p403 = pneg %p206
        %p404 = pneg %p203
        %s405 = smul.u32 %s29, 2
        %s406 = sadd.s32 %s405, %s30
        %s407 = smul.u32 2, %s406
        %p408 = scmp.lt.s32.totalorder %s407, 7
        %s409 = scalar_select %p408, %s407, 7
        %s410 = smul.addr %s409, 4
        %s411 = scalar_lea.vmem %s6, %s410
        %p412 = pneg %p232
        %p413 = pneg %p229
        %p414 = scmp.lt.s32.totalorder %s29, 1
        %s415 = scalar_select %p414, %s29, 1
        %s416 = smul.addr %s415, 8
        %s417 = scalar_lea.vmem %s7, %s416
        %p418 = pneg %p258
        %p419 = pneg %p255
        %p420 = scmp.lt.s32.totalorder %s29, 1
        %s421 = scalar_select %p420, %s29, 1
        %s422 = smul.addr %s421, 8
        %s423 = scalar_lea.vmem %s8, %s422
        %p424 = pneg %p284
        %p425 = pneg %p281
        %p426 = scmp.lt.s32.totalorder %s29, 1
        %s427 = scalar_select %p426, %s29, 1
        %s428 = smul.addr %s427, 8
        %s429 = scalar_lea.vmem %s9, %s428
        %s430 = smul.u32 %s29, 2
        %s431 = sadd.s32 %s430, %s30
        %s432 = smul.u32 2, %s431
        %s433 = smul.u32 %s29, 2
        %s434 = sadd.s32 %s433, %s30
        %s435 = smul.u32 2, %s434
        %p436 = scmp.lt.s32.totalorder %s435, 7
        %s437 = scalar_select %p436, %s435, 7
        %s438 = scalar_lea.vmem %s5, %s437
        %s439 = smul.u32 %s29, 2
        %s440 = sadd.s32 %s439, %s30
        %s441 = smul.u32 2, %s440
        %s442 = smul.u32 %s29, 2
        %s443 = sadd.s32 %s442, %s30
        %s444 = smul.u32 2, %s443
        %p445 = scmp.lt.s32.totalorder %s444, 7
        %s446 = scalar_select %p445, %s444, 7
        %s447 = smul.addr %s446, 4
        %s448 = scalar_lea.vmem %s6, %s447
        %s449 = smul.u32 %s29, 2
        %s450 = sadd.s32 %s449, %s30
        %s451 = smul.u32 2, %s450
        %p452 = scmp.lt.s32.totalorder %s29, 1
        %s453 = scalar_select %p452, %s29, 1
        %s454 = smul.addr %s453, 8
        %s455 = scalar_lea.vmem %s7, %s454
        %p456 = scmp.lt.s32.totalorder %s29, 1
        %s457 = scalar_select %p456, %s29, 1
        %s458 = smul.addr %s457, 8
        %s459 = scalar_lea.vmem %s8, %s458
        %p460 = scmp.lt.s32.totalorder %s29, 1
        %s461 = scalar_select %p460, %s29, 1
        %s462 = smul.addr %s461, 8
        %s463 = scalar_lea.vmem %s9, %s462
        %p465 = scmp.eq.s32.totalorder %s30, 0
        // Predicated region
        $region53: #{lang_decoder_forward.1} parent=43 // pred_check
          %p466 = pneg %p465
        $region54: #{lang_decoder_forward.1} parent=43 // pred_check_branch
          %468 = sbr.rel (%p466) target = $region56
        $region55: #{lang_decoder_forward.1} parent=43 // pred_region
          %v469 = vld [vmem:[%s0] sm:$0xff]
          %v470 = vld [vmem:[%s0 + $0x8] sm:$0xff]
          %v471 = vld [vmem:[%s0 + $0x10] sm:$0xff]
          %v472 = vld [vmem:[#allocation5] sm:$0xff]
          %v473 = vld [vmem:[#allocation5 + $0x8] sm:$0xff]
          %v474 = vld [vmem:[#allocation5 + $0x10] sm:$0xff]
          %v475 = vld [vmem:[#allocation5 + $0x18] sm:$0xff]
          %v476 = vld [vmem:[#allocation5 + $0x20] sm:$0xff]
          %v477 = vld [vmem:[#allocation5 + $0x28] sm:$0xff]
          %v478 = vld [vmem:[#allocation5 + $0x30] sm:$0xff]
          %v479 = vld [vmem:[#allocation5 + $0x38] sm:$0xff]
          %v480 = vld [vmem:[#allocation5 + $0x40] sm:$0xff]
          %v481 = vld [vmem:[#allocation5 + $0x48] sm:$0xff]
          %v482 = vld [vmem:[#allocation5 + $0x50] sm:$0xff]
          %v483 = vld [vmem:[#allocation5 + $0x58] sm:$0xff]
          %v484 = vld [vmem:[#allocation5 + $0x60] sm:$0xff]
          %v485 = vld [vmem:[#allocation5 + $0x68] sm:$0xff]
          %v486 = vld [vmem:[#allocation5 + $0x70] sm:$0xff]
          %v487 = vld [vmem:[#allocation5 + $0x78] sm:$0xff]
          %v488 = vld [vmem:[#allocation5 + $0x80] sm:$0xff]
          %v489 = vld [vmem:[#allocation5 + $0x88] sm:$0xff]
          %v490 = vld [vmem:[#allocation5 + $0x90] sm:$0xff]
          %v491 = vld [vmem:[#allocation5 + $0x98] sm:$0xff]
          %v492 = vld [vmem:[#allocation5 + $0xa0] sm:$0xff]
          %v493 = vld [vmem:[#allocation5 + $0xa8] sm:$0xff]
          %v494 = vld [vmem:[#allocation5 + $0xb0] sm:$0xff]
          %v495 = vld [vmem:[#allocation5 + $0xb8] sm:$0xff]
          %v496 = vld [vmem:[#allocation5 + $0xc0] sm:$0xff]
          %v497 = vld [vmem:[#allocation5 + $0xc8] sm:$0xff]
          %v498 = vld [vmem:[#allocation5 + $0xd0] sm:$0xff]
          %v499 = vld [vmem:[#allocation5 + $0xd8] sm:$0xff]
          %v500 = vld [vmem:[#allocation5 + $0xe0] sm:$0xff]
          %v501 = vld [vmem:[#allocation5 + $0xe8] sm:$0xff]
          %v502 = vld [vmem:[#allocation5 + $0xf0] sm:$0xff]
          %v503 = vld [vmem:[#allocation5 + $0xf8] sm:$0xff]
          %v504 = vld [vmem:[#allocation5 + $0x100] sm:$0xff]
          %v505 = vld [vmem:[#allocation5 + $0x108] sm:$0xff]
          %v506 = vld [vmem:[#allocation5 + $0x110] sm:$0xff]
          %v507 = vld [vmem:[#allocation5 + $0x118] sm:$0xff]
          %v508 = vld [vmem:[#allocation5 + $0x120] sm:$0xff]
          %v509 = vld [vmem:[#allocation5 + $0x128] sm:$0xff]
          %v510 = vld [vmem:[#allocation5 + $0x130] sm:$0xff]
          %v511 = vld [vmem:[#allocation5 + $0x138] sm:$0xff]
          %v512 = vld [vmem:[#allocation5 + $0x140] sm:$0xff]
          %v513 = vld [vmem:[#allocation5 + $0x148] sm:$0xff]
          %v514 = vld [vmem:[#allocation5 + $0x150] sm:$0xff]
          %v515 = vld [vmem:[#allocation5 + $0x158] sm:$0xff]
          %v516 = vld [vmem:[#allocation5 + $0x160] sm:$0xff]
          %v517 = vld [vmem:[#allocation5 + $0x168] sm:$0xff]
          %v518 = vld [vmem:[#allocation5 + $0x170] sm:$0xff]
          %v519 = vld [vmem:[#allocation5 + $0x178] sm:$0xff]
          %v520 = vld [vmem:[#allocation5 + $0x180] sm:$0xff]
          %v521 = vld [vmem:[#allocation5 + $0x188] sm:$0xff]
          %v522 = vld [vmem:[#allocation5 + $0x190] sm:$0xff]
          %v523 = vld [vmem:[#allocation5 + $0x198] sm:$0xff]
          %v524 = vld [vmem:[#allocation5 + $0x1a0] sm:$0xff]
          %v525 = vld [vmem:[#allocation5 + $0x1a8] sm:$0xff]
          %v526 = vld [vmem:[#allocation5 + $0x1b0] sm:$0xff]
          %v527 = vld [vmem:[#allocation5 + $0x1b8] sm:$0xff]
          %v528 = vld [vmem:[#allocation5 + $0x1c0] sm:$0xff]
          %v529 = vld [vmem:[#allocation5 + $0x1c8] sm:$0xff]
          %v530 = vld [vmem:[#allocation5 + $0x1d0] sm:$0xff]
          %v531 = vld [vmem:[#allocation5 + $0x1d8] sm:$0xff]
          %v532 = vld [vmem:[#allocation5 + $0x1e0] sm:$0xff]
          %v533 = vld [vmem:[#allocation5 + $0x1e8] sm:$0xff]
          %v534 = vld [vmem:[#allocation5 + $0x1f0] sm:$0xff]
          %v535 = vld [vmem:[#allocation5 + $0x1f8] sm:$0xff]
          %v536 = vld [vmem:[#allocation5 + $0x200] sm:$0xff]
          %v537 = vld [vmem:[#allocation5 + $0x208] sm:$0xff]
          %v538 = vld [vmem:[#allocation5 + $0x210] sm:$0xff]
          %v539 = vld [vmem:[#allocation5 + $0x218] sm:$0xff]
          %v540 = vld [vmem:[#allocation5 + $0x220] sm:$0xff]
          %v541 = vld [vmem:[#allocation5 + $0x228] sm:$0xff]
          %v542 = vld [vmem:[#allocation5 + $0x230] sm:$0xff]
          %v543 = vld [vmem:[#allocation5 + $0x238] sm:$0xff]
          %v544 = vld [vmem:[#allocation5 + $0x240] sm:$0xff]
          %v545 = vld [vmem:[#allocation5 + $0x248] sm:$0xff]
          %v546 = vld [vmem:[#allocation5 + $0x250] sm:$0xff]
          %v547 = vld [vmem:[#allocation5 + $0x258] sm:$0xff]
          %v548 = vld [vmem:[#allocation5 + $0x260] sm:$0xff]
          %v549 = vld [vmem:[#allocation5 + $0x268] sm:$0xff]
          %v550 = vld [vmem:[#allocation5 + $0x270] sm:$0xff]
          %v551 = vld [vmem:[#allocation5 + $0x278] sm:$0xff]
          %v552 = vld [vmem:[#allocation5 + $0x280] sm:$0xff]
          %v553 = vld [vmem:[#allocation5 + $0x288] sm:$0xff]
          %v554 = vld [vmem:[#allocation5 + $0x290] sm:$0xff]
          %v555 = vld [vmem:[#allocation5 + $0x298] sm:$0xff]
          %v556 = vld [vmem:[#allocation5 + $0x2a0] sm:$0xff]
          %v557 = vld [vmem:[#allocation5 + $0x2a8] sm:$0xff]
          %v558 = vld [vmem:[#allocation5 + $0x2b0] sm:$0xff]
          %v559 = vld [vmem:[#allocation5 + $0x2b8] sm:$0xff]
          %v560 = vld [vmem:[#allocation5 + $0x2c0] sm:$0xff]
          %v561 = vld [vmem:[#allocation5 + $0x2c8] sm:$0xff]
          %v562 = vld [vmem:[#allocation5 + $0x2d0] sm:$0xff]
          %v563 = vld [vmem:[#allocation5 + $0x2d8] sm:$0xff]
          %v564 = vld [vmem:[#allocation5 + $0x2e0] sm:$0xff]
          %v565 = vld [vmem:[#allocation5 + $0x2e8] sm:$0xff]
          %v566 = vld [vmem:[#allocation5 + $0x2f0] sm:$0xff]
          %v567 = vld [vmem:[#allocation5 + $0x2f8] sm:$0xff]
          %v568 = vld [vmem:[#allocation5 + $0x300] sm:$0xff]
          %v569 = vld [vmem:[#allocation5 + $0x308] sm:$0xff]
          %v570 = vld [vmem:[#allocation5 + $0x310] sm:$0xff]
          %v571 = vld [vmem:[#allocation5 + $0x318] sm:$0xff]
          %v572 = vld [vmem:[#allocation5 + $0x320] sm:$0xff]
          %v573 = vld [vmem:[#allocation5 + $0x328] sm:$0xff]
          %v574 = vld [vmem:[#allocation5 + $0x330] sm:$0xff]
          %v575 = vld [vmem:[#allocation5 + $0x338] sm:$0xff]
          %v576 = vld [vmem:[#allocation5 + $0x340] sm:$0xff]
          %v577 = vld [vmem:[#allocation5 + $0x348] sm:$0xff]
          %v578 = vld [vmem:[#allocation5 + $0x350] sm:$0xff]
          %v579 = vld [vmem:[#allocation5 + $0x358] sm:$0xff]
          %v580 = vld [vmem:[#allocation5 + $0x360] sm:$0xff]
          %v581 = vld [vmem:[#allocation5 + $0x368] sm:$0xff]
          %v582 = vld [vmem:[#allocation5 + $0x370] sm:$0xff]
          %v583 = vld [vmem:[#allocation5 + $0x378] sm:$0xff]
          %v584 = vld [vmem:[#allocation5 + $0x380] sm:$0xff]
          %v585 = vld [vmem:[#allocation5 + $0x388] sm:$0xff]
          %v586 = vld [vmem:[#allocation5 + $0x390] sm:$0xff]
          %v587 = vld [vmem:[#allocation5 + $0x398] sm:$0xff]
          %v588 = vld [vmem:[#allocation5 + $0x3a0] sm:$0xff]
          %v589 = vld [vmem:[#allocation5 + $0x3a8] sm:$0xff]
          %v590 = vld [vmem:[#allocation5 + $0x3b0] sm:$0xff]
          %v591 = vld [vmem:[#allocation5 + $0x3b8] sm:$0xff]
          %v592 = vld [vmem:[#allocation5 + $0x3c0] sm:$0xff]
          %v593 = vld [vmem:[#allocation5 + $0x3c8] sm:$0xff]
          %v594 = vld [vmem:[#allocation5 + $0x3d0] sm:$0xff]
          %v595 = vld [vmem:[#allocation5 + $0x3d8] sm:$0xff]
          %v596 = vld [vmem:[#allocation5 + $0x3e0] sm:$0xff]
          %v597 = vld [vmem:[#allocation5 + $0x3e8] sm:$0xff]
          %v598 = vld [vmem:[#allocation5 + $0x3f0] sm:$0xff]
          %v599 = vld [vmem:[#allocation5 + $0x3f8] sm:$0xff]
          %v600 = vld [vmem:[#allocation5 + $0x400] sm:$0xff]
          %v601 = vld [vmem:[#allocation5 + $0x408] sm:$0xff]
          %v602 = vld [vmem:[#allocation5 + $0x410] sm:$0xff]
          %v603 = vld [vmem:[#allocation5 + $0x418] sm:$0xff]
          %v604 = vld [vmem:[#allocation5 + $0x420] sm:$0xff]
          %v605 = vld [vmem:[#allocation5 + $0x428] sm:$0xff]
          %v606 = vld [vmem:[#allocation5 + $0x430] sm:$0xff]
          %v607 = vld [vmem:[#allocation5 + $0x438] sm:$0xff]
          %v608 = vld [vmem:[#allocation5 + $0x440] sm:$0xff]
          %v609 = vld [vmem:[#allocation5 + $0x448] sm:$0xff]
          %v610 = vld [vmem:[#allocation5 + $0x450] sm:$0xff]
          %v611 = vld [vmem:[#allocation5 + $0x458] sm:$0xff]
          %v612 = vld [vmem:[#allocation5 + $0x460] sm:$0xff]
          %v613 = vld [vmem:[#allocation5 + $0x468] sm:$0xff]
          %v614 = vld [vmem:[#allocation5 + $0x470] sm:$0xff]
          %v615 = vld [vmem:[#allocation5 + $0x478] sm:$0xff]
          %v616 = vld [vmem:[#allocation5 + $0x480] sm:$0xff]
          %v617 = vld [vmem:[#allocation5 + $0x488] sm:$0xff]
          %v618 = vld [vmem:[#allocation5 + $0x490] sm:$0xff]
          %v619 = vld [vmem:[#allocation5 + $0x498] sm:$0xff]
          %v620 = vld [vmem:[#allocation5 + $0x4a0] sm:$0xff]
          %v621 = vld [vmem:[#allocation5 + $0x4a8] sm:$0xff]
          %v622 = vld [vmem:[#allocation5 + $0x4b0] sm:$0xff]
          %v623 = vld [vmem:[#allocation5 + $0x4b8] sm:$0xff]
          %v624 = vld [vmem:[#allocation5 + $0x4c0] sm:$0xff]
          %v625 = vld [vmem:[#allocation5 + $0x4c8] sm:$0xff]
          %v626 = vld [vmem:[#allocation5 + $0x4d0] sm:$0xff]
          %v627 = vld [vmem:[#allocation5 + $0x4d8] sm:$0xff]
          %v628 = vld [vmem:[#allocation5 + $0x4e0] sm:$0xff]
          %v629 = vld [vmem:[#allocation5 + $0x4e8] sm:$0xff]
          %v630 = vld [vmem:[#allocation5 + $0x4f0] sm:$0xff]
          %v631 = vld [vmem:[#allocation5 + $0x4f8] sm:$0xff]
          %v632 = vld [vmem:[#allocation5 + $0x500] sm:$0xff]
          %v633 = vld [vmem:[#allocation5 + $0x508] sm:$0xff]
          %v634 = vld [vmem:[#allocation5 + $0x510] sm:$0xff]
          %v635 = vld [vmem:[#allocation5 + $0x518] sm:$0xff]
          %v636 = vld [vmem:[#allocation5 + $0x520] sm:$0xff]
          %v637 = vld [vmem:[#allocation5 + $0x528] sm:$0xff]
          %v638 = vld [vmem:[#allocation5 + $0x530] sm:$0xff]
          %v639 = vld [vmem:[#allocation5 + $0x538] sm:$0xff]
          %v640 = vld [vmem:[#allocation5 + $0x540] sm:$0xff]
          %v641 = vld [vmem:[#allocation5 + $0x548] sm:$0xff]
          %v642 = vld [vmem:[#allocation5 + $0x550] sm:$0xff]
          %v643 = vld [vmem:[#allocation5 + $0x558] sm:$0xff]
          %v644 = vld [vmem:[#allocation5 + $0x560] sm:$0xff]
          %v645 = vld [vmem:[#allocation5 + $0x568] sm:$0xff]
          %v646 = vld [vmem:[#allocation5 + $0x570] sm:$0xff]
          %v647 = vld [vmem:[#allocation5 + $0x578] sm:$0xff]
          %v648 = vld [vmem:[#allocation5 + $0x580] sm:$0xff]
          %v649 = vld [vmem:[#allocation5 + $0x588] sm:$0xff]
          %v650 = vld [vmem:[#allocation5 + $0x590] sm:$0xff]
          %v651 = vld [vmem:[#allocation5 + $0x598] sm:$0xff]
          %v652 = vld [vmem:[#allocation5 + $0x5a0] sm:$0xff]
          %v653 = vld [vmem:[#allocation5 + $0x5a8] sm:$0xff]
          %v654 = vld [vmem:[#allocation5 + $0x5b0] sm:$0xff]
          %v655 = vld [vmem:[#allocation5 + $0x5b8] sm:$0xff]
          %v656 = vld [vmem:[#allocation5 + $0x5c0] sm:$0xff]
          %v657 = vld [vmem:[#allocation5 + $0x5c8] sm:$0xff]
          %v658 = vld [vmem:[#allocation5 + $0x5d0] sm:$0xff]
          %v659 = vld [vmem:[#allocation5 + $0x5d8] sm:$0xff]
          %v660 = vld [vmem:[#allocation5 + $0x5e0] sm:$0xff]
          %v661 = vld [vmem:[#allocation5 + $0x5e8] sm:$0xff]
          %v662 = vld [vmem:[#allocation5 + $0x5f0] sm:$0xff]
          %v663 = vld [vmem:[#allocation5 + $0x5f8] sm:$0xff]
          %v664 = vld [vmem:[%s3] sm:$0xf]
          %v666 = vlaneseq
          %v667 = vshrl.u32 %v666, 7
          %v668 = vsub.s32 0, %v667
          %v669 = vrot.slane %v664, %v668
          %v670 = vlaneseq
          %v671 = vshrl.u32 %v670, 7
          %v672 = vsub.s32 1, %v671
          %v673 = vrot.slane %v664, %v672
          %v674 = vlaneseq
          %v675 = vshrl.u32 %v674, 7
          %v676 = vsub.s32 2, %v675
          %v677 = vrot.slane %v664, %v676
          %v678 = vlaneseq
          %v679 = vshrl.u32 %v678, 7
          %v680 = vsub.s32 3, %v679
          %v681 = vrot.slane %v664, %v680
          %686 = vmatprep.subr.mxu0 %v473
          %687 = vmatpush1.msra.mxu0 %v472
          %688 = vmatprep.subr.mxu0 %v477
          %689 = vmatpush1.msra.mxu0 %v476
          %690 = vmatprep.subr.mxu0 %v481
          %691 = vmatpush1.msra.mxu0 %v480
          %692 = vmatprep.subr.mxu0 %v485
          %693 = vmatpush1.msra.mxu0 %v484
          %694 = vmatprep.subr.mxu0 %v489
          %695 = vmatpush1.msra.mxu0 %v488
          %696 = vmatprep.subr.mxu0 %v493
          %697 = vmatpush1.msra.mxu0 %v492
          %698 = vmatprep.subr.mxu0 %v497
          %699 = vmatpush1.msra.mxu0 %v496
          %700 = vmatprep.subr.mxu0 %v501
          %701 = vmatpush1.msra.mxu0 %v500
          %702 = vmatprep.subr.mxu0 %v505
          %703 = vmatpush1.msra.mxu0 %v504
          %704 = vmatprep.subr.mxu0 %v509
          %705 = vmatpush1.msra.mxu0 %v508
          %706 = vmatprep.subr.mxu0 %v513
          %707 = vmatpush1.msra.mxu0 %v512
          %708 = vmatprep.subr.mxu0 %v517
          %709 = vmatpush1.msra.mxu0 %v516
          %710 = vmatprep.subr.mxu0 %v521
          %711 = vmatpush1.msra.mxu0 %v520
          %712 = vmatprep.subr.mxu0 %v525
          %713 = vmatpush1.msra.mxu0 %v524
          %714 = vmatprep.subr.mxu0 %v529
          %715 = vmatpush1.msra.mxu0 %v528
          %716 = vmatprep.subr.mxu0 %v533
          %717 = vmatpush1.msra.mxu0 %v532
          %718 = vmatprep.subr.mxu0 %v537
          %719 = vmatpush1.msra.mxu0 %v536
          %720 = vmatprep.subr.mxu0 %v541
          %721 = vmatpush1.msra.mxu0 %v540
          %722 = vmatprep.subr.mxu0 %v545
          %723 = vmatpush1.msra.mxu0 %v544
          %724 = vmatprep.subr.mxu0 %v549
          %725 = vmatpush1.msra.mxu0 %v548
          %726 = vmatprep.subr.mxu0 %v553
          %727 = vmatpush1.msra.mxu0 %v552
          %728 = vmatprep.subr.mxu0 %v557
          %729 = vmatpush1.msra.mxu0 %v556
          %730 = vmatprep.subr.mxu0 %v561
          %731 = vmatpush1.msra.mxu0 %v560
          %732 = vmatprep.subr.mxu0 %v565
          %733 = vmatpush1.msra.mxu0 %v564
          %734 = vmatprep.subr.mxu0 %v569
          %735 = vmatpush1.msra.mxu0 %v568
          %736 = vmatprep.subr.mxu0 %v573
          %737 = vmatpush1.msra.mxu0 %v572
          %738 = vmatprep.subr.mxu0 %v577
          %739 = vmatpush1.msra.mxu0 %v576
          %740 = vmatprep.subr.mxu0 %v581
          %741 = vmatpush1.msra.mxu0 %v580
          %742 = vmatprep.subr.mxu0 %v585
          %743 = vmatpush1.msra.mxu0 %v584
          %744 = vmatprep.subr.mxu0 %v589
          %745 = vmatpush1.msra.mxu0 %v588
          %746 = vmatprep.subr.mxu0 %v593
          %747 = vmatpush1.msra.mxu0 %v592
          %748 = vmatprep.subr.mxu0 %v597
          %749 = vmatpush1.msra.mxu0 %v596
          %750 = vmatprep.mubr.f32.mxu0 %v470
          %751 = vmatmul.mubr.f32.gmra.mrb[0].mxu0 %v469
          %v752 = vpop.f32.mrb[0].mxu0
          %v753 = vadd.f32 %v669, %v752
          %v754 = vpop.f32.mrb[0].mxu0
          %v755 = vadd.f32 %v673, %v754
          %756 = vdwg.mxu0
          %757 = vmatprep.subr.mxu0 %v601
          %758 = vmatpush1.msra.mxu0 %v600
          %759 = vmatprep.subr.mxu0 %v605
          %760 = vmatpush1.msra.mxu0 %v604
          %761 = vmatprep.subr.mxu0 %v609
          %762 = vmatpush1.msra.mxu0 %v608
          %763 = vmatprep.subr.mxu0 %v613
          %764 = vmatpush1.msra.mxu0 %v612
          %765 = vmatprep.subr.mxu0 %v617
          %766 = vmatpush1.msra.mxu0 %v616
          %767 = vmatprep.subr.mxu0 %v621
          %768 = vmatpush1.msra.mxu0 %v620
          %769 = vmatprep.subr.mxu0 %v625
          %770 = vmatpush1.msra.mxu0 %v624
          %771 = vmatprep.subr.mxu0 %v629
          %772 = vmatpush1.msra.mxu0 %v628
          %773 = vmatprep.subr.mxu0 %v633
          %774 = vmatpush1.msra.mxu0 %v632
          %775 = vmatprep.subr.mxu0 %v637
          %776 = vmatpush1.msra.mxu0 %v636
          %777 = vmatprep.subr.mxu0 %v641
          %778 = vmatpush1.msra.mxu0 %v640
          %779 = vmatprep.subr.mxu0 %v645
          %780 = vmatpush1.msra.mxu0 %v644
          %781 = vmatprep.subr.mxu0 %v649
          %782 = vmatpush1.msra.mxu0 %v648
          %783 = vmatprep.subr.mxu0 %v653
          %784 = vmatpush1.msra.mxu0 %v652
          %785 = vmatprep.subr.mxu0 %v657
          %786 = vmatpush1.msra.mxu0 %v656
          %787 = vmatprep.subr.mxu0 %v661
          %788 = vmatpush1.msra.mxu0 %v660
          %789 = vmatprep.subr.mxu0 0.0
          %790 = vmatpush1.msra.mxu0 0.0
          %791 = vmatprep.subr.mxu0 0.0
          %792 = vmatpush1.msra.mxu0 0.0
          %793 = vmatprep.subr.mxu0 0.0
          %794 = vmatpush1.msra.mxu0 0.0
          %795 = vmatprep.subr.mxu0 0.0
          %796 = vmatpush1.msra.mxu0 0.0
          %797 = vmatprep.subr.mxu0 0.0
          %798 = vmatpush1.msra.mxu0 0.0
          %799 = vmatprep.subr.mxu0 0.0
          %800 = vmatpush1.msra.mxu0 0.0
          %801 = vmatprep.subr.mxu0 0.0
          %802 = vmatpush1.msra.mxu0 0.0
          %803 = vmatprep.subr.mxu0 0.0
          %804 = vmatpush1.msra.mxu0 0.0
          %805 = vmatprep.subr.mxu0 0.0
          %806 = vmatpush1.msra.mxu0 0.0
          %807 = vmatprep.subr.mxu0 0.0
          %808 = vmatpush1.msra.mxu0 0.0
          %809 = vmatprep.subr.mxu0 0.0
          %810 = vmatpush1.msra.mxu0 0.0
          %811 = vmatprep.subr.mxu0 0.0
          %812 = vmatpush1.msra.mxu0 0.0
          %813 = vmatprep.subr.mxu0 0.0
          %814 = vmatpush1.msra.mxu0 0.0
          %815 = vmatprep.subr.mxu0 0.0
          %816 = vmatpush1.msra.mxu0 0.0
          %817 = vmatprep.subr.mxu0 0.0
          %818 = vmatpush1.msra.mxu0 0.0
          %819 = vmatprep.subr.mxu0 0.0
          %820 = vmatpush1.msra.mxu0 0.0
          %821 = vmatprep.mubr.f32.mxu0 0.0
          %822 = vmatmul.mubr.f32.gmra.mrb[0].mxu0 %v471
          %v823 = vpop.f32.mrb[0].mxu0
          %v824 = vadd.f32 %v753, %v823
          %v825 = vpop.f32.mrb[0].mxu0
          %v826 = vadd.f32 %v755, %v825
          %827 = vdwg.mxu0
          %828 = vmatprep.subr.mxu0 %v475
          %829 = vmatpush1.msra.mxu0 %v474
          %830 = vmatprep.subr.mxu0 %v479
          %831 = vmatpush1.msra.mxu0 %v478
          %832 = vmatprep.subr.mxu0 %v483
          %833 = vmatpush1.msra.mxu0 %v482
          %834 = vmatprep.subr.mxu0 %v487
          %835 = vmatpush1.msra.mxu0 %v486
          %836 = vmatprep.subr.mxu0 %v491
          %837 = vmatpush1.msra.mxu0 %v490
          %838 = vmatprep.subr.mxu0 %v495
          %839 = vmatpush1.msra.mxu0 %v494
          %840 = vmatprep.subr.mxu0 %v499
          %841 = vmatpush1.msra.mxu0 %v498
          %842 = vmatprep.subr.mxu0 %v503
          %843 = vmatpush1.msra.mxu0 %v502
          %844 = vmatprep.subr.mxu0 %v507
          %845 = vmatpush1.msra.mxu0 %v506
          %846 = vmatprep.subr.mxu0 %v511
          %847 = vmatpush1.msra.mxu0 %v510
          %848 = vmatprep.subr.mxu0 %v515
          %849 = vmatpush1.msra.mxu0 %v514
          %850 = vmatprep.subr.mxu0 %v519
          %851 = vmatpush1.msra.mxu0 %v518
          %852 = vmatprep.subr.mxu0 %v523
          %853 = vmatpush1.msra.mxu0 %v522
          %854 = vmatprep.subr.mxu0 %v527
          %855 = vmatpush1.msra.mxu0 %v526
          %856 = vmatprep.subr.mxu0 %v531
          %857 = vmatpush1.msra.mxu0 %v530
          %858 = vmatprep.subr.mxu0 %v535
          %859 = vmatpush1.msra.mxu0 %v534
          %860 = vmatprep.subr.mxu0 %v539
          %861 = vmatpush1.msra.mxu0 %v538
          %862 = vmatprep.subr.mxu0 %v543
          %863 = vmatpush1.msra.mxu0 %v542
          %864 = vmatprep.subr.mxu0 %v547
          %865 = vmatpush1.msra.mxu0 %v546
          %866 = vmatprep.subr.mxu0 %v551
          %867 = vmatpush1.msra.mxu0 %v550
          %868 = vmatprep.subr.mxu0 %v555
          %869 = vmatpush1.msra.mxu0 %v554
          %870 = vmatprep.subr.mxu0 %v559
          %871 = vmatpush1.msra.mxu0 %v558
          %872 = vmatprep.subr.mxu0 %v563
          %873 = vmatpush1.msra.mxu0 %v562
          %874 = vmatprep.subr.mxu0 %v567
          %875 = vmatpush1.msra.mxu0 %v566
          %876 = vmatprep.subr.mxu0 %v571
          %877 = vmatpush1.msra.mxu0 %v570
          %878 = vmatprep.subr.mxu0 %v575
          %879 = vmatpush1.msra.mxu0 %v574
          %880 = vmatprep.subr.mxu0 %v579
          %881 = vmatpush1.msra.mxu0 %v578
          %882 = vmatprep.subr.mxu0 %v583
          %883 = vmatpush1.msra.mxu0 %v582
          %884 = vmatprep.subr.mxu0 %v587
          %885 = vmatpush1.msra.mxu0 %v586
          %886 = vmatprep.subr.mxu0 %v591
          %887 = vmatpush1.msra.mxu0 %v590
          %888 = vmatprep.subr.mxu0 %v595
          %889 = vmatpush1.msra.mxu0 %v594
          %890 = vmatprep.subr.mxu0 %v599
          %891 = vmatpush1.msra.mxu0 %v598
          %892 = vmatprep.mubr.f32.mxu0 %v470
          %893 = vmatmul.mubr.f32.gmra.mrb[0].mxu0 %v469
          %v894 = vpop.f32.mrb[0].mxu0
          %v895 = vadd.f32 %v677, %v894
          %v896 = vpop.f32.mrb[0].mxu0
          %v897 = vadd.f32 %v681, %v896
          %898 = vdwg.mxu0
          %899 = vmatprep.subr.mxu0 %v603
          %900 = vmatpush1.msra.mxu0 %v602
          %901 = vmatprep.subr.mxu0 %v607
          %902 = vmatpush1.msra.mxu0 %v606
          %903 = vmatprep.subr.mxu0 %v611
          %904 = vmatpush1.msra.mxu0 %v610
          %905 = vmatprep.subr.mxu0 %v615
          %906 = vmatpush1.msra.mxu0 %v614
          %907 = vmatprep.subr.mxu0 %v619
          %908 = vmatpush1.msra.mxu0 %v618
          %909 = vmatprep.subr.mxu0 %v623
          %910 = vmatpush1.msra.mxu0 %v622
          %911 = vmatprep.subr.mxu0 %v627
          %912 = vmatpush1.msra.mxu0 %v626
          %913 = vmatprep.subr.mxu0 %v631
          %914 = vmatpush1.msra.mxu0 %v630
          %915 = vmatprep.subr.mxu0 %v635
          %916 = vmatpush1.msra.mxu0 %v634
          %917 = vmatprep.subr.mxu0 %v639
          %918 = vmatpush1.msra.mxu0 %v638
          %919 = vmatprep.subr.mxu0 %v643
          %920 = vmatpush1.msra.mxu0 %v642
          %921 = vmatprep.subr.mxu0 %v647
          %922 = vmatpush1.msra.mxu0 %v646
          %923 = vmatprep.subr.mxu0 %v651
          %924 = vmatpush1.msra.mxu0 %v650
          %925 = vmatprep.subr.mxu0 %v655
          %926 = vmatpush1.msra.mxu0 %v654
          %927 = vmatprep.subr.mxu0 %v659
          %928 = vmatpush1.msra.mxu0 %v658
          %929 = vmatprep.subr.mxu0 %v663
          %930 = vmatpush1.msra.mxu0 %v662
          %931 = vmatprep.subr.mxu0 0.0
          %932 = vmatpush1.msra.mxu0 0.0
          %933 = vmatprep.subr.mxu0 0.0
          %934 = vmatpush1.msra.mxu0 0.0
          %935 = vmatprep.subr.mxu0 0.0
          %936 = vmatpush1.msra.mxu0 0.0
          %937 = vmatprep.subr.mxu0 0.0
          %938 = vmatpush1.msra.mxu0 0.0
          %939 = vmatprep.subr.mxu0 0.0
          %940 = vmatpush1.msra.mxu0 0.0
          %941 = vmatprep.subr.mxu0 0.0
          %942 = vmatpush1.msra.mxu0 0.0
          %943 = vmatprep.subr.mxu0 0.0
          %944 = vmatpush1.msra.mxu0 0.0
          %945 = vmatprep.subr.mxu0 0.0
          %946 = vmatpush1.msra.mxu0 0.0
          %947 = vmatprep.subr.mxu0 0.0
          %948 = vmatpush1.msra.mxu0 0.0
          %949 = vmatprep.subr.mxu0 0.0
          %950 = vmatpush1.msra.mxu0 0.0
          %951 = vmatprep.subr.mxu0 0.0
          %952 = vmatpush1.msra.mxu0 0.0
          %953 = vmatprep.subr.mxu0 0.0
          %954 = vmatpush1.msra.mxu0 0.0
          %955 = vmatprep.subr.mxu0 0.0
          %956 = vmatpush1.msra.mxu0 0.0
          %957 = vmatprep.subr.mxu0 0.0
          %958 = vmatpush1.msra.mxu0 0.0
          %959 = vmatprep.subr.mxu0 0.0
          %960 = vmatpush1.msra.mxu0 0.0
          %961 = vmatprep.subr.mxu0 0.0
          %962 = vmatpush1.msra.mxu0 0.0
          %963 = vmatprep.mubr.f32.mxu0 0.0
          %964 = vmatmul.mubr.f32.gmra.mrb[0].mxu0 %v471
          %v965 = vpop.f32.mrb[0].mxu0
          %v966 = vadd.f32 %v895, %v965
          %v967 = vpop.f32.mrb[0].mxu0
          %v968 = vadd.f32 %v897, %v967
          %969 = vdwg.mxu0
          %v970 = vxor.u32 %v824, 2147483648
          %v971 = vmul.f32 %v970, 1.442695
          %v972 = vpow.pop %v971
          %v973 = vadd.f32 %v972, 1.0
          %v974 = vrcp.pop %v973
          %v975 = vmul.f32 1.0, %v974
          %v976 = vxor.u32 %v826, 2147483648
          %v977 = vmul.f32 %v976, 1.442695
          %v978 = vpow.pop %v977
          %v979 = vadd.f32 %v978, 1.0
          %v980 = vrcp.pop %v979
          %v981 = vmul.f32 1.0, %v980
          %v982 = vtanh.pop %v966
          %v983 = vxor.u32 %v968, 2147483648
          %v984 = vmul.f32 %v983, 1.442695
          %v985 = vpow.pop %v984
          %v986 = vadd.f32 %v985, 1.0
          %v987 = vrcp.pop %v986
          %v988 = vmul.f32 1.0, %v987
          %v989 = vld [vmem:[%s1] sm:$0xff]
          %v990 = vmul.f32 %v981, %v989
          %v991 = vmul.f32 %v975, %v982
          %v992 = vadd.f32 %v990, %v991
          %v993 = vtanh.pop %v992
          %v994 = vmul.f32 %v988, %v993
          %995 = vst [vmem:[%s459] sm:$0xff] %v992
          %996 = vst [vmem:[%s455] sm:$0xff] %v994
          %v997 = vpack.c.bf16 %v994, %v994
          %998 = vst [vmem:[#allocation2] sm:$0xf] %v997
          %vm999 = vcmask 7168
          %1000 = vst.msk [vmem:[#allocation3] sm:$0xff] %vm999, -inf
          %1001 = vst.msk [vmem:[#allocation4] sm:$0xff] %vm999, 0.0
        $region56: #{lang_decoder_forward.1} parent=43 // pred_fallthru
          _
        %v1002 = vld [vmem:[#allocation2] sm:$0xf]
        %v1003 = vld [vmem:[%s375] sm:$0xff]
        %v1004 = vld [vmem:[%s375 + $0x8] sm:$0xff]
        %v1005 = vld [vmem:[%s375 + $0x10] sm:$0xff]
        %v1006 = vld [vmem:[%s375 + $0x18] sm:$0xff]
        %v1007 = vld [vmem:[%s375 + $0x20] sm:$0xff]
        %v1008 = vld [vmem:[%s375 + $0x28] sm:$0xff]
        %v1009 = vld [vmem:[%s375 + $0x30] sm:$0xff]
        %v1010 = vld [vmem:[%s375 + $0x38] sm:$0xff]
        %v1011 = vld [vmem:[%s375 + $0x40] sm:$0xff]
        %v1012 = vld [vmem:[%s375 + $0x48] sm:$0xff]
        %v1013 = vld [vmem:[%s375 + $0x50] sm:$0xff]
        %v1014 = vld [vmem:[%s375 + $0x58] sm:$0xff]
        %v1015 = vld [vmem:[%s375 + $0x60] sm:$0xff]
        %v1016 = vld [vmem:[%s375 + $0x68] sm:$0xff]
        %v1017 = vld [vmem:[%s375 + $0x70] sm:$0xff]
        %v1018 = vld [vmem:[%s375 + $0x78] sm:$0xff]
        %v1019 = vld [vmem:[%s438] sm:$0x3]
        %v1021 = vlaneseq
        %v1022 = vshrl.u32 %v1021, 7
        %v1023 = vsub.s32 0, %v1022
        %v1024 = vrot.slane %v1019, %v1023
        %v1025 = vlaneseq
        %v1026 = vshrl.u32 %v1025, 7
        %v1027 = vsub.s32 1, %v1026
        %v1028 = vrot.slane %v1019, %v1027
        %v1047 = vunpack.c.l.b16 %v1003
        %v1048 = vunpack.c.h.b16 %v1003
        %v1049 = vunpack.c.l.b16 %v1004
        %v1050 = vunpack.c.h.b16 %v1004
        %v1051 = vunpack.c.l.b16 %v1005
        %v1052 = vunpack.c.h.b16 %v1005
        %v1053 = vunpack.c.l.b16 %v1006
        %v1054 = vunpack.c.h.b16 %v1006
        %v1055 = vunpack.c.l.b16 %v1007
        %v1056 = vunpack.c.h.b16 %v1007
        %v1057 = vunpack.c.l.b16 %v1008
        %v1058 = vunpack.c.h.b16 %v1008
        %v1059 = vunpack.c.l.b16 %v1009
        %v1060 = vunpack.c.h.b16 %v1009
        %v1061 = vunpack.c.l.b16 %v1010
        %v1062 = vunpack.c.h.b16 %v1010
        %v1063 = vunpack.c.l.b16 %v1011
        %v1064 = vunpack.c.h.b16 %v1011
        %v1065 = vunpack.c.l.b16 %v1012
        %v1066 = vunpack.c.h.b16 %v1012
        %v1067 = vunpack.c.l.b16 %v1013
        %v1068 = vunpack.c.h.b16 %v1013
        %v1069 = vunpack.c.l.b16 %v1014
        %v1070 = vunpack.c.h.b16 %v1014
        %v1071 = vunpack.c.l.b16 %v1015
        %v1072 = vunpack.c.h.b16 %v1015
        %v1073 = vunpack.c.l.b16 %v1016
        %v1074 = vunpack.c.h.b16 %v1016
        %v1075 = vunpack.c.l.b16 %v1017
        %v1076 = vunpack.c.h.b16 %v1017
        %v1077 = vunpack.c.l.b16 %v1018
        %v1078 = vunpack.c.h.b16 %v1018
        %v1079 = vpack.c.b16 %v1049, %v1047
        %v1080 = vpack.c.b16 %v1050, %v1048
        %v1081 = vpack.c.b16 %v1053, %v1051
        %v1082 = vpack.c.b16 %v1054, %v1052
        %v1083 = vpack.c.b16 %v1057, %v1055
        %v1084 = vpack.c.b16 %v1058, %v1056
        %v1085 = vpack.c.b16 %v1061, %v1059
        %v1086 = vpack.c.b16 %v1062, %v1060
        %v1087 = vpack.c.b16 %v1065, %v1063
        %v1088 = vpack.c.b16 %v1066, %v1064
        %v1089 = vpack.c.b16 %v1069, %v1067
        %v1090 = vpack.c.b16 %v1070, %v1068
        %v1091 = vpack.c.b16 %v1073, %v1071
        %v1092 = vpack.c.b16 %v1074, %v1072
        %v1093 = vpack.c.b16 %v1077, %v1075
        %v1094 = vpack.c.b16 %v1078, %v1076
        %1111 = vmatprep.subr.bf16.mxu0 %v1080
        %1112 = vmatpush1.bf16.msra.mxu0 %v1079
        %1113 = vmatprep.subr.bf16.mxu0 %v1082
        %1114 = vmatpush1.bf16.msra.mxu0 %v1081
        %1115 = vmatprep.subr.bf16.mxu0 %v1084
        %1116 = vmatpush1.bf16.msra.mxu0 %v1083
        %1117 = vmatprep.subr.bf16.mxu0 %v1086
        %1118 = vmatpush1.bf16.msra.mxu0 %v1085
        %1119 = vmatprep.subr.bf16.mxu0 %v1088
        %1120 = vmatpush1.bf16.msra.mxu0 %v1087
        %1121 = vmatprep.subr.bf16.mxu0 %v1090
        %1122 = vmatpush1.bf16.msra.mxu0 %v1089
        %1123 = vmatprep.subr.bf16.mxu0 %v1092
        %1124 = vmatpush1.bf16.msra.mxu0 %v1091
        %1125 = vmatprep.subr.bf16.mxu0 %v1094
        %1126 = vmatpush1.bf16.msra.mxu0 %v1093
        %1127 = vmatprep.subr.bf16.mxu0 0
        %1128 = vmatpush1.bf16.msra.mxu0 0
        %1129 = vmatprep.subr.bf16.mxu0 0
        %1130 = vmatpush1.bf16.msra.mxu0 0
        %1131 = vmatprep.subr.bf16.mxu0 0
        %1132 = vmatpush1.bf16.msra.mxu0 0
        %1133 = vmatprep.subr.bf16.mxu0 0
        %1134 = vmatpush1.bf16.msra.mxu0 0
        %1135 = vmatprep.subr.bf16.mxu0 0
        %1136 = vmatpush1.bf16.msra.mxu0 0
        %1137 = vmatprep.subr.bf16.mxu0 0
        %1138 = vmatpush1.bf16.msra.mxu0 0
        %1139 = vmatprep.subr.bf16.mxu0 0
        %1140 = vmatpush1.bf16.msra.mxu0 0
        %1141 = vmatprep.subr.bf16.mxu0 0
        %1142 = vmatpush1.bf16.msra.mxu0 0
        %1143 = vmatprep.mubr.bf16.mxu0 0
        %1144 = vmatmul.mubr.bf16.gmra.mrb[0].mxu0 %v1002
        %v1145 = vpop.f32.mrb[0].mxu0
        %v1146 = vadd.f32 %v1024, %v1145
        %v1147 = vpop.f32.mrb[0].mxu0
        %v1148 = vadd.f32 %v1028, %v1147
        %v1149 = vpop.f32.mrb[0].mxu0
        %v1150 = vpop.f32.mrb[0].mxu0
        %1151 = vdwg.mxu0
        %v1152 = vpack.c.bf16 %v1146, %v1146
        %v1153 = vpack.c.bf16 %v1148, %v1148
        %v1156 = vunpack.c.l.b16 %v1152
        %v1157 = vunpack.c.l.b16 %v1153
        %v1158 = vpack.c.b16 %v1157, %v1156
        %1160 = vst [vmem:[%s448] sm:$0xff] %v1158
        %v1161 = vld [vmem:[#allocation3] sm:$0xff]
        %v1162 = vmax.f32 %v1146, %v1148
        %1163 = vmax.xlane.f32.xlu0 %v1162
        %v1164 = vpop.xlane.xlu0 %1163
        %v1165 = vmax.f32 %v1161, %v1164
        %v1166 = vld [vmem:[#allocation4] sm:$0xff]
        %v1167 = vsub.f32 %v1161, %v1165
        %v1168 = vmul.f32 %v1167, 1.442695
        %v1169 = vpow.pop %v1168
        %v1170 = vmul.f32 %v1166, %v1169
        %1172 = vset.pattern.permute.xlu0 0
        %1173 = vperm.xlu0 %1172, %v1165
        %v1174 = vpop.permute.xlu0 %1173
        %v1176 = vsub.f32 %v1146, %v1174
        %v1177 = vsub.f32 %v1148, %v1174
        %v1178 = vmul.f32 %v1176, 1.442695
        %v1179 = vpow.pop %v1178
        %v1180 = vmul.f32 %v1177, 1.442695
        %v1181 = vpow.pop %v1180
        %v1182 = vadd.f32 %v1179, %v1181
        %1183 = vadd.xlane.f32.xlu0 %v1182
        %v1184 = vpop.xlane.xlu0 %1183
        %v1185 = vadd.f32 %v1170, %v1184
        %vm1186 = vcmask 7168
        %1187 = vst.msk [vmem:[#allocation4] sm:$0xff] %vm1186, %v1185
        %1188 = vst.msk [vmem:[#allocation3] sm:$0xff] %vm1186, %v1165
        %p1189 = scmp.eq.s32.totalorder %s30, 1
        // Predicated region
        $region57: #{lang_decoder_forward.1} parent=43 // pred_check
          %p1190 = pneg %p1189
        $region58: #{lang_decoder_forward.1} parent=43 // pred_check_branch
          %1192 = sbr.rel (%p1190) target = $region60
        $region59: #{lang_decoder_forward.1} parent=43 // pred_region
          %v1193 = vld [vmem:[#allocation3] sm:$0xff]
          %v1194 = vld [vmem:[#allocation4] sm:$0xff]
          %v1195 = vlog2.pop %v1194
          %v1196 = vmul.f32 %v1195, 0.6931472
          %v1197 = vadd.f32 %v1193, %v1196
          %1198 = vst.msk [vmem:[%s463] sm:$0xff] %vm1186, %v1197
        $region60: #{lang_decoder_forward.1} parent=43 // pred_fallthru
          _
        %s1199 = smul.u32 %s29, 2
        %s1200 = sadd.s32 %s1199, %s30
        %s1201 = smul.u32 2, %s1200
        %p1202 = scmp.lt.s32.totalorder %s1201, 7
        %s1203 = scalar_select %p1202, %s1201, 7
        %s1204 = smul.addr %s1203, 4
        %s1205 = scalar_lea.vmem %s6, %s1204
        %p1206 = scmp.lt.s32.totalorder %s29, 1
        %s1207 = scalar_select %p1206, %s29, 1
        %s1208 = smul.addr %s1207, 8
        %s1209 = scalar_lea.vmem %s7, %s1208
        %p1210 = scmp.lt.s32.totalorder %s29, 1
        %s1211 = scalar_select %p1210, %s29, 1
        %s1212 = smul.addr %s1211, 8
        %s1213 = scalar_lea.vmem %s8, %s1212
        %p1214 = scmp.lt.s32.totalorder %s29, 1
        %s1215 = scalar_select %p1214, %s29, 1
        %s1216 = smul.addr %s1215, 8
        %s1217 = scalar_lea.vmem %s9, %s1216
        // Predicated region
        $region61: #{lang_decoder_forward.1} parent=43 // pred_check
          %p1218 = pneg %p203
        $region62: #{lang_decoder_forward.1} parent=43 // pred_check_branch
          %1220 = sbr.rel (%p1218) target = $region64
        $region63: #{lang_decoder_forward.1} parent=43 // pred_region
          %s1221 = smul.u32 %s29, 2
          %s1222 = sadd.s32 %s1221, %s30
          %s1223 = smul.u32 2, %s1222
        $region64: #{lang_decoder_forward.1} parent=43 // pred_fallthru
          _
        // Predicated region
        $region65: #{lang_decoder_forward.1} parent=43 // pred_check
          %p1224 = pneg %p229
        $region66: #{lang_decoder_forward.1} parent=43 // pred_check_branch
          %1226 = sbr.rel (%p1224) target = $region68
        $region67: #{lang_decoder_forward.1} parent=43 // pred_region
          _
        $region68: #{lang_decoder_forward.1} parent=43 // pred_fallthru
          _
        // Predicated region
        $region69: #{lang_decoder_forward.1} parent=43 // pred_check
          %p1227 = pneg %p255
        $region70: #{lang_decoder_forward.1} parent=43 // pred_check_branch
          %1229 = sbr.rel (%p1227) target = $region72
        $region71: #{lang_decoder_forward.1} parent=43 // pred_region
          _
        $region72: #{lang_decoder_forward.1} parent=43 // pred_fallthru
          _
        // Predicated region
        $region73: #{lang_decoder_forward.1} parent=43 // pred_check
          %p1230 = pneg %p281
        $region74: #{lang_decoder_forward.1} parent=43 // pred_check_branch
          %1232 = sbr.rel (%p1230) target = $region76
        $region75: #{lang_decoder_forward.1} parent=43 // pred_region
          _
        $region76: #{lang_decoder_forward.1} parent=43 // pred_fallthru
          _
      $region44: #{lang_decoder_forward.1} parent=5 // pred_fallthru
        _
      %p1233 = scmp.le.s32.totalorder 2, %s20
      // Predicated region
      $region77: #{lang_decoder_forward.1} parent=5 // pred_check
        %p1234 = pneg %p1233
      $region78: #{lang_decoder_forward.1} parent=5 // pred_check_branch
        %1236 = sbr.rel (%p1234) target = $region80
      $region79: #{lang_decoder_forward.1} parent=5 // pred_region
        %s1237 = ssub.s32 %s20, 2
        // Predicated region
        $region81: #{lang_decoder_forward.1} parent=79 // pred_check
          %p1238 = pneg %p209
        $region82: #{lang_decoder_forward.1} parent=79 // pred_check_branch
          %1240 = sbr.rel (%p1238) target = $region84
        $region83: #{lang_decoder_forward.1} parent=79 // pred_region
          %s1241 = smul.u32 %s31, 2
          %s1242 = sadd.s32 %s1241, %s32
          %s1243 = smul.u32 2, %s1242
          %p1244 = scmp.lt.s32.totalorder %s1243, 7
          %s1245 = scalar_select %p1244, %s1243, 7
          %s1246 = smul.addr %s1245, 4
          %s1247 = scalar_lea.vmem %s6, %s1246
        $region84: #{lang_decoder_forward.1} parent=79 // pred_fallthru
          _
        // Predicated region
        $region85: #{lang_decoder_forward.1} parent=79 // pred_check
          %p1248 = pneg %p235
        $region86: #{lang_decoder_forward.1} parent=79 // pred_check_branch
          %1250 = sbr.rel (%p1248) target = $region88
        $region87: #{lang_decoder_forward.1} parent=79 // pred_region
          %p1251 = scmp.lt.s32.totalorder %s31, 1
          %s1252 = scalar_select %p1251, %s31, 1
          %s1253 = smul.addr %s1252, 8
          %s1254 = scalar_lea.vmem %s7, %s1253
        $region88: #{lang_decoder_forward.1} parent=79 // pred_fallthru
          _
        // Predicated region
        $region89: #{lang_decoder_forward.1} parent=79 // pred_check
          %p1255 = pneg %p261
        $region90: #{lang_decoder_forward.1} parent=79 // pred_check_branch
          %1257 = sbr.rel (%p1255) target = $region92
        $region91: #{lang_decoder_forward.1} parent=79 // pred_region
          %p1258 = scmp.lt.s32.totalorder %s31, 1
          %s1259 = scalar_select %p1258, %s31, 1
          %s1260 = smul.addr %s1259, 8
          %s1261 = scalar_lea.vmem %s8, %s1260
        $region92: #{lang_decoder_forward.1} parent=79 // pred_fallthru
          _
        // Predicated region
        $region93: #{lang_decoder_forward.1} parent=79 // pred_check
          %p1262 = pneg %p287
        $region94: #{lang_decoder_forward.1} parent=79 // pred_check_branch
          %1264 = sbr.rel (%p1262) target = $region96
        $region95: #{lang_decoder_forward.1} parent=79 // pred_region
          %p1265 = scmp.lt.s32.totalorder %s31, 1
          %s1266 = scalar_select %p1265, %s31, 1
          %s1267 = smul.addr %s1266, 8
          %s1268 = scalar_lea.vmem %s9, %s1267
        $region96: #{lang_decoder_forward.1} parent=79 // pred_fallthru
          _
      $region80: #{lang_decoder_forward.1} parent=5 // pred_fallthru
        _
    $region6: #{lang_decoder_forward.1} parent=1 // loop_footer
      %s24 = sadd.s32 1, %s20
    $region7: #{lang_decoder_forward.1} parent=1 // loop_footer_branch
      %19 = sbr.rel target = $region3
    $region8: #{lang_decoder_forward.1} parent=1 // loop_exit
      _
    %1269 = vsyncpa [#allocation6], 1
    %s1270 = scalar_lea.sflag [#allocation6], 1
    %1271 = vsyncpa %s1270, 1
    %1272 = vsyncpa [#allocation8], 1
    %s1273 = scalar_lea.sflag [#allocation8], 1
    %1274 = vsyncpa %s1273, 1

</llo_original>
